<compile_context>
chip_gen: v7x
topology: tpu7x:2x2x1
jax: 0.10.0
libtpu: 0.0.40
codegen_flags: <defaults>
</compile_context>

<pallas_src>
import functools

import jax
import jax.numpy as jnp
import numpy as np
from jax import lax
from jax.experimental import pallas as pl
from jax.experimental.pallas import tpu as pltpu


def _soft_triplet_bi_kernel(q_ref, k_ref, labc_ref, labr_ref, lab_ref, w_ref,
                            loss_ref, pos_ref, neg_ref,
                            qn_scr, kn_scr, e1_scr, e2_scr,
                            *, alpha, n):
    a = jnp.float32(alpha)
    q = q_ref[...].astype(jnp.float32)
    k = k_ref[...].astype(jnp.float32)

    # Row-wise L2 normalization (matches inputs / torch.norm(inputs, dim=1, keepdim=True)).
    qn = q / jnp.sqrt(jnp.sum(q * q, axis=1, keepdims=True))
    kn = k / jnp.sqrt(jnp.sum(k * k, axis=1, keepdims=True))
    qn_scr[...] = qn
    kn_scr[...] = kn

    # Both similarity matrices on the MXU; simT is computed directly (no transpose op).
    dn = (((1,), (1,)), ((), ()))
    sim1 = lax.dot_general(qn, kn, dn, preferred_element_type=jnp.float32)  # (n,n): q->k
    sim2 = lax.dot_general(kn, qn, dn, preferred_element_type=jnp.float32)  # (n,n): k->q

    # Precompute exp(alpha*sim) once (O(n^2) EUP work); the O(n^3) inner loop then
    # only pays one transcendental (the log) per element.
    e1_scr[...] = jnp.exp(a * sim1)
    e2_scr[...] = jnp.exp(a * sim2)

    labc = labc_ref[...]   # (n, 1) int32
    labr = labr_ref[...]   # (1, n) int32

    def body(i, acc):
        lab_i = lab_ref[i]                                      # scalar int32 from SMEM
        pos_col = (labc == lab_i).astype(jnp.float32)           # (n, 1): pos[i, j]
        neg_row = 1.0 - (labr == lab_i).astype(jnp.float32)     # (1, n): neg[i, k]
        mask = pos_col * neg_row                                # (n, n), shared by both dirs

        # Row i of the precomputed exp(+alpha*sim) matrices (lane-dense row loads).
        e1_row = e1_scr[pl.ds(i, 1), :]                         # (1, n)
        e2_row = e2_scr[pl.ds(i, 1), :]                         # (1, n)

        # Column-shaped exp(-alpha*sim[i, :]) via an (n,d)@(d,1) matvec against
        # normalized row i — comes out naturally as (n, 1), no transpose needed.
        qrow = qn_scr[pl.ds(i, 1), :]                           # (1, d)
        krow = kn_scr[pl.ds(i, 1), :]                           # (1, d)
        r1_col = jnp.exp(-a * lax.dot_general(kn, qrow, dn,
                                              preferred_element_type=jnp.float32))  # (n,1)
        r2_col = jnp.exp(-a * lax.dot_general(qn, krow, dn,
                                              preferred_element_type=jnp.float32))  # (n,1)

        # tile[j, k] = log(1 + exp(alpha*(sim[i,k] - sim[i,j]))), both directions fused.
        t = jnp.log(1.0 + r1_col * e1_row) + jnp.log(1.0 + r2_col * e2_row)
        # w_ref[i] = 1 / (pos_n * neg_n) precomputed outside the kernel (hoisted).
        return acc + jnp.sum(mask * t) * w_ref[i]

    unroll = True if n <= 32 else 8
    total = lax.fori_loop(0, n, body, jnp.float32(0.0), unroll=unroll)
    # total = n*loss_1 + n*loss_2  ->  final = (loss_1 + loss_2) / 2.
    loss_ref[0, 0] = total / jnp.float32(2 * n)

    # mean_pos_sim / mean_neg_sim intentionally come from the LAST row only: the
    # PyTorch module reads the loop variables pos_sim / neg_sim after the loop ends.
    lab_last = lab_ref[n - 1]
    pos_last = (labr == lab_last).astype(jnp.float32)           # (1, n)
    neg_last = 1.0 - pos_last
    p_l = jnp.sum(pos_last)
    n_l = jnp.float32(n) - p_l
    s1_last = sim1[n - 1:n, :]
    s2_last = sim2[n - 1:n, :]
    pos_ref[0, 0] = 0.5 * (jnp.sum(s1_last * pos_last) + jnp.sum(s2_last * pos_last)) / p_l
    neg_ref[0, 0] = 0.5 * (jnp.sum(s1_last * neg_last) + jnp.sum(s2_last * neg_last)) / n_l


def soft_triplet_bi_loss(inputs_q, inputs_k, labels, alpha=15):
    """forward(): both (q,k) and (k,q) directions fused into one pallas_call."""
    n, d = inputs_q.shape
    labels = labels.astype(jnp.int32)
    labc = labels.reshape(n, 1)
    labr = labels.reshape(1, n)

    # Hoisted per-row positive counts -> loss weights 1/(pos_n*neg_n), read from SMEM.
    # TODO(synk): the torch isnan/isinf runtime exception + .item() host sync are not
    # translated; a batch with a single label class still yields inf/nan like PyTorch.
    pos_cnt = jnp.sum((labc == labr), axis=1).astype(jnp.float32)       # (n,)
    inv_w = 1.0 / (pos_cnt * (jnp.float32(n) - pos_cnt))                # (n,)

    vmem = pl.BlockSpec(memory_space=pltpu.MemorySpace.VMEM)
    smem = pl.BlockSpec(memory_space=pltpu.MemorySpace.SMEM)

    # Rough VMEM budget: 2x(n,d) + 2x(n,n) f32 scratch plus a few live (n,n)
    # temporaries.  Only raise the scoped limit when it actually matters so we stay
    # inside v7x's 64 MiB physical VMEM for sizes that fit.
    est = 4 * (4 * n * n + 4 * n * d) + 2 * int(inputs_q.size) * inputs_q.dtype.itemsize
    compiler_params = None
    if est > (12 << 20):
        compiler_params = pltpu.CompilerParams(
            vmem_limit_bytes=int(min(2 * est, 100 << 20)))

    kernel = functools.partial(_soft_triplet_bi_kernel, alpha=float(alpha), n=n)
    loss, mps, mns = pl.pallas_call(
        kernel,
        out_shape=(jax.ShapeDtypeStruct((1, 1), jnp.float32),) * 3,
        in_specs=[vmem, vmem, vmem, vmem, smem, smem],
        out_specs=(smem, smem, smem),
        scratch_shapes=[
            pltpu.VMEM((n, d), jnp.float32),   # normalized q rows
            pltpu.VMEM((n, d), jnp.float32),   # normalized k rows
            pltpu.VMEM((n, n), jnp.float32),   # exp(+alpha*sim)   (q->k)
            pltpu.VMEM((n, n), jnp.float32),   # exp(+alpha*simT)  (k->q)
        ],
        compiler_params=compiler_params,
    )(inputs_q, inputs_k, labc, labr, labels, inv_w)
    return loss[0, 0], mps[0, 0], mns[0, 0]


# ---------------- numpy reference (mirrors the PyTorch loop exactly) ----------------
def _ref_single(q, k, labels, alpha=15.0):
    q = np.asarray(q, np.float32)
    k = np.asarray(k, np.float32)
    labels = np.asarray(labels)
    qn = q / np.linalg.norm(q, axis=1, keepdims=True)
    kn = k / np.linalg.norm(k, axis=1, keepdims=True)
    sim = qn @ kn.T
    n = q.shape[0]
    pos = labels[:, None] == labels[None, :]
    neg = ~pos
    loss_batch = 0.0
    ps = ns = None
    for i in range(n):
        ps = sim[i][pos[i]]
        ns = sim[i][neg[i]]
        d = ns[None, :] - ps[:, None]
        loss_batch += np.mean(np.log(1.0 + np.exp(d * alpha)))
    return loss_batch / n, float(ps.mean()), float(ns.mean())


def _ref_bi(q, k, labels, alpha=15.0):
    l1, p1, n1 = _ref_single(q, k, labels, alpha)
    l2, p2, n2 = _ref_single(k, q, labels, alpha)
    return (l1 + l2) * 0.5, (p1 + p2) * 0.5, (n1 + n2) * 0.5


if __name__ == "__main__":
    key = jax.random.PRNGKey(0)
    kq, kk = jax.random.split(key)
    n, d = 8, 32
    inputs_q = jax.random.normal(kq, (n, d), dtype=jnp.float32)
    inputs_k = jax.random.normal(kk, (n, d), dtype=jnp.float32)
    labels = jnp.array([0, 1, 2, 3, 0, 1, 2, 3], dtype=jnp.int32)

    loss, mean_pos, mean_neg = soft_triplet_bi_loss(inputs_q, inputs_k, labels, alpha=15)
    (loss, mean_pos, mean_neg) = jax.block_until_ready((loss, mean_pos, mean_neg))

    ref_loss, ref_pos, ref_neg = _ref_bi(inputs_q, inputs_k, labels, alpha=15.0)
    np.testing.assert_allclose(np.asarray(loss), ref_loss, rtol=2e-3, atol=5e-4)
    np.testing.assert_allclose(np.asarray(mean_pos), ref_pos, rtol=2e-3, atol=5e-4)
    np.testing.assert_allclose(np.asarray(mean_neg), ref_neg, rtol=2e-3, atol=5e-4)

    print("KERNEL_OK")
</pallas_src>

<mosaic_0001>
module attributes {stable_mosaic.version = 11 : i64} {
  func.func @_soft_triplet_bi_kernel(%arg0: memref<8x32xf32, #tpu.memory_space<vmem>>, %arg1: memref<8x32xf32, #tpu.memory_space<vmem>>, %arg2: memref<8x1xi32, #tpu.memory_space<vmem>>, %arg3: memref<1x8xi32, #tpu.memory_space<vmem>>, %arg4: memref<8xi32, #tpu.memory_space<smem>>, %arg5: memref<8xf32, #tpu.memory_space<smem>>, %arg6: memref<1x1xf32, #tpu.memory_space<smem>>, %arg7: memref<1x1xf32, #tpu.memory_space<smem>>, %arg8: memref<1x1xf32, #tpu.memory_space<smem>>, %arg9: memref<8x32xf32, #tpu.memory_space<vmem>>, %arg10: memref<8x32xf32, #tpu.memory_space<vmem>>, %arg11: memref<8x8xf32, #tpu.memory_space<vmem>>, %arg12: memref<8x8xf32, #tpu.memory_space<vmem>>) attributes {dimension_semantics = [], scalar_prefetch = 0 : i64, scratch_operands = 4 : i64, tpu.core_type = #tpu.core_type<tc>} {
    %c0 = arith.constant 0 : index
    %c0_0 = arith.constant 0 : index
    %0 = vector.load %arg0[%c0, %c0_0] : memref<8x32xf32, #tpu.memory_space<vmem>>, vector<8x32xf32>
    %c0_1 = arith.constant 0 : index
    %c0_2 = arith.constant 0 : index
    %1 = vector.load %arg1[%c0_1, %c0_2] : memref<8x32xf32, #tpu.memory_space<vmem>>, vector<8x32xf32>
    %2 = arith.mulf %0, %0 : vector<8x32xf32>
    %cst = arith.constant dense<0.000000e+00> : vector<8xf32>
    %3 = vector.multi_reduction <add>, %2, %cst [1] : vector<8x32xf32> to vector<8xf32>
    %4 = vector.shape_cast %3 : vector<8xf32> to vector<8x1xf32>
    %5 = math.sqrt %4 : vector<8x1xf32>
    %6 = vector.broadcast %5 : vector<8x1xf32> to vector<8x32xf32>
    %7 = arith.divf %0, %6 : vector<8x32xf32>
    %8 = arith.mulf %1, %1 : vector<8x32xf32>
    %cst_3 = arith.constant dense<0.000000e+00> : vector<8xf32>
    %9 = vector.multi_reduction <add>, %8, %cst_3 [1] : vector<8x32xf32> to vector<8xf32>
    %10 = vector.shape_cast %9 : vector<8xf32> to vector<8x1xf32>
    %11 = math.sqrt %10 : vector<8x1xf32>
    %12 = vector.broadcast %11 : vector<8x1xf32> to vector<8x32xf32>
    %13 = arith.divf %1, %12 : vector<8x32xf32>
    %c0_4 = arith.constant 0 : index
    %c0_5 = arith.constant 0 : index
    %14 = vector.load %arg9[%c0_4, %c0_5] : memref<8x32xf32, #tpu.memory_space<vmem>>, vector<8x32xf32>
    tpu.vector_store %arg9[%c0_4, %c0_5], %7 {strides = array<i32>} : memref<8x32xf32, #tpu.memory_space<vmem>>, vector<8x32xf32>,
    %c0_6 = arith.constant 0 : index
    %c0_7 = arith.constant 0 : index
    %15 = vector.load %arg10[%c0_6, %c0_7] : memref<8x32xf32, #tpu.memory_space<vmem>>, vector<8x32xf32>
    tpu.vector_store %arg10[%c0_6, %c0_7], %13 {strides = array<i32>} : memref<8x32xf32, #tpu.memory_space<vmem>>, vector<8x32xf32>,
    %cst_8 = arith.constant dense<0.000000e+00> : vector<8x8xf32>
    %16 = tpu.matmul %7, %13, %cst_8 {dimension_numbers = #tpu.dot_dimension_numbers<[1], [1], [0], [0], [0, 0, 1, 0], [], []>} : vector<8x32xf32>, vector<8x32xf32>, vector<8x8xf32> -> vector<8x8xf32>
    %cst_9 = arith.constant dense<0.000000e+00> : vector<8x8xf32>
    %17 = tpu.matmul %13, %7, %cst_9 {dimension_numbers = #tpu.dot_dimension_numbers<[1], [1], [0], [0], [0, 0, 1, 0], [], []>} : vector<8x32xf32>, vector<8x32xf32>, vector<8x8xf32> -> vector<8x8xf32>
    %cst_10 = arith.constant 1.500000e+01 : f32
    %18 = vector.broadcast %cst_10 : f32 to vector<8x8xf32>
    %19 = arith.mulf %18, %16 : vector<8x8xf32>
    %20 = math.exp %19 : vector<8x8xf32>
    %c0_11 = arith.constant 0 : index
    %c0_12 = arith.constant 0 : index
    %21 = vector.load %arg11[%c0_11, %c0_12] : memref<8x8xf32, #tpu.memory_space<vmem>>, vector<8x8xf32>
    tpu.vector_store %arg11[%c0_11, %c0_12], %20 {strides = array<i32>} : memref<8x8xf32, #tpu.memory_space<vmem>>, vector<8x8xf32>,
    %cst_13 = arith.constant 1.500000e+01 : f32
    %22 = vector.broadcast %cst_13 : f32 to vector<8x8xf32>
    %23 = arith.mulf %22, %17 : vector<8x8xf32>
    %24 = math.exp %23 : vector<8x8xf32>
    %c0_14 = arith.constant 0 : index
    %c0_15 = arith.constant 0 : index
    %25 = vector.load %arg12[%c0_14, %c0_15] : memref<8x8xf32, #tpu.memory_space<vmem>>, vector<8x8xf32>
    tpu.vector_store %arg12[%c0_14, %c0_15], %24 {strides = array<i32>} : memref<8x8xf32, #tpu.memory_space<vmem>>, vector<8x8xf32>,
    %c0_16 = arith.constant 0 : index
    %c0_17 = arith.constant 0 : index
    %26 = vector.load %arg2[%c0_16, %c0_17] : memref<8x1xi32, #tpu.memory_space<vmem>>, vector<8x1xi32>
    %c0_18 = arith.constant 0 : index
    %c0_19 = arith.constant 0 : index
    %27 = vector.load %arg3[%c0_18, %c0_19] : memref<1x8xi32, #tpu.memory_space<vmem>>, vector<1x8xi32>
    %cst_20 = arith.constant 1.500000e+01 : f32
    %cst_21 = arith.constant 0.000000e+00 : f32
    %c0_i32 = arith.constant 0 : i32
    %28 = arith.index_cast %c0_i32 : i32 to index
    %29 = memref.load %arg4[%28] : memref<8xi32, #tpu.memory_space<smem>>
    %30 = vector.broadcast %29 : i32 to vector<8x1xi32>
    %31 = arith.cmpi eq, %26, %30 : vector<8x1xi32>
    %32 = arith.extui %31 : vector<8x1xi1> to vector<8x1xi32>
    %33 = arith.sitofp %32 : vector<8x1xi32> to vector<8x1xf32>
    %34 = vector.broadcast %29 : i32 to vector<1x8xi32>
    %35 = arith.cmpi eq, %27, %34 : vector<1x8xi32>
    %36 = arith.extui %35 : vector<1x8xi1> to vector<1x8xi32>
    %37 = arith.sitofp %36 : vector<1x8xi32> to vector<1x8xf32>
    %cst_22 = arith.constant 1.000000e+00 : f32
    %38 = vector.broadcast %cst_22 : f32 to vector<1x8xf32>
    %39 = arith.subf %38, %37 : vector<1x8xf32>
    %40 = vector.broadcast %33 : vector<8x1xf32> to vector<8x8xf32>
    %41 = vector.broadcast %39 : vector<1x8xf32> to vector<8x8xf32>
    %42 = arith.mulf %40, %41 : vector<8x8xf32>
    %43 = arith.index_cast %c0_i32 : i32 to index
    %c0_23 = arith.constant 0 : index
    %44 = vector.load %arg11[%43, %c0_23] : memref<8x8xf32, #tpu.memory_space<vmem>>, vector<1x8xf32>
    %45 = arith.index_cast %c0_i32 : i32 to index
    %c0_24 = arith.constant 0 : index
    %46 = vector.load %arg12[%45, %c0_24] : memref<8x8xf32, #tpu.memory_space<vmem>>, vector<1x8xf32>
    %47 = arith.index_cast %c0_i32 : i32 to index
    %c0_25 = arith.constant 0 : index
    %48 = vector.load %arg9[%47, %c0_25] : memref<8x32xf32, #tpu.memory_space<vmem>>, vector<1x32xf32>
    %49 = arith.index_cast %c0_i32 : i32 to index
    %c0_26 = arith.constant 0 : index
    %50 = vector.load %arg10[%49, %c0_26] : memref<8x32xf32, #tpu.memory_space<vmem>>, vector<1x32xf32>
    %cst_27 = arith.constant 0.000000e+00 : f32
    %51 = arith.subf %cst_27, %cst_20 : f32
    %cst_28 = arith.constant dense<0.000000e+00> : vector<8x1xf32>
    %52 = tpu.matmul %13, %48, %cst_28 {dimension_numbers = #tpu.dot_dimension_numbers<[1], [1], [0], [0], [0, 0, 1, 0], [], []>} : vector<8x32xf32>, vector<1x32xf32>, vector<8x1xf32> -> vector<8x1xf32>
    %53 = vector.broadcast %51 : f32 to vector<8x1xf32>
    %54 = arith.mulf %53, %52 : vector<8x1xf32>
    %55 = math.exp %54 : vector<8x1xf32>
    %cst_29 = arith.constant 0.000000e+00 : f32
    %56 = arith.subf %cst_29, %cst_20 : f32
    %cst_30 = arith.constant dense<0.000000e+00> : vector<8x1xf32>
    %57 = tpu.matmul %7, %50, %cst_30 {dimension_numbers = #tpu.dot_dimension_numbers<[1], [1], [0], [0], [0, 0, 1, 0], [], []>} : vector<8x32xf32>, vector<1x32xf32>, vector<8x1xf32> -> vector<8x1xf32>
    %58 = vector.broadcast %56 : f32 to vector<8x1xf32>
    %59 = arith.mulf %58, %57 : vector<8x1xf32>
    %60 = math.exp %59 : vector<8x1xf32>
    %61 = vector.broadcast %55 : vector<8x1xf32> to vector<8x8xf32>
    %62 = vector.broadcast %44 : vector<1x8xf32> to vector<8x8xf32>
    %63 = arith.mulf %61, %62 : vector<8x8xf32>
    %cst_31 = arith.constant 1.000000e+00 : f32
    %64 = vector.broadcast %cst_31 : f32 to vector<8x8xf32>
    %65 = arith.addf %64, %63 : vector<8x8xf32>
    %66 = math.log %65 : vector<8x8xf32>
    %67 = vector.broadcast %60 : vector<8x1xf32> to vector<8x8xf32>
    %68 = vector.broadcast %46 : vector<1x8xf32> to vector<8x8xf32>
    %69 = arith.mulf %67, %68 : vector<8x8xf32>
    %cst_32 = arith.constant 1.000000e+00 : f32
    %70 = vector.broadcast %cst_32 : f32 to vector<8x8xf32>
    %71 = arith.addf %70, %69 : vector<8x8xf32>
    %72 = math.log %71 : vector<8x8xf32>
    %73 = arith.addf %66, %72 : vector<8x8xf32>
    %74 = arith.mulf %42, %73 : vector<8x8xf32>
    %75 = vector.shape_cast %74 : vector<8x8xf32> to vector<1x8x8xf32>
    %cst_33 = arith.constant dense<0.000000e+00> : vector<1xf32>
    %76 = vector.multi_reduction <add>, %75, %cst_33 [1, 2] : vector<1x8x8xf32> to vector<1xf32>
    %77 = vector.shape_cast %76 : vector<1xf32> to vector<1x1x1xf32>
    %78 = vector.extract %77[0, 0, 0] : f32 from vector<1x1x1xf32>
    %79 = arith.index_cast %c0_i32 : i32 to index
    %80 = memref.load %arg5[%79] : memref<8xf32, #tpu.memory_space<smem>>
    %81 = arith.mulf %78, %80 : f32
    %82 = arith.addf %cst_21, %81 : f32
    %c1_i32 = arith.constant 1 : i32
    %83 = arith.index_cast %c1_i32 : i32 to index
    %84 = memref.load %arg4[%83] : memref<8xi32, #tpu.memory_space<smem>>
    %85 = vector.broadcast %84 : i32 to vector<8x1xi32>
    %86 = arith.cmpi eq, %26, %85 : vector<8x1xi32>
    %87 = arith.extui %86 : vector<8x1xi1> to vector<8x1xi32>
    %88 = arith.sitofp %87 : vector<8x1xi32> to vector<8x1xf32>
    %89 = vector.broadcast %84 : i32 to vector<1x8xi32>
    %90 = arith.cmpi eq, %27, %89 : vector<1x8xi32>
    %91 = arith.extui %90 : vector<1x8xi1> to vector<1x8xi32>
    %92 = arith.sitofp %91 : vector<1x8xi32> to vector<1x8xf32>
    %cst_34 = arith.constant 1.000000e+00 : f32
    %93 = vector.broadcast %cst_34 : f32 to vector<1x8xf32>
    %94 = arith.subf %93, %92 : vector<1x8xf32>
    %95 = vector.broadcast %88 : vector<8x1xf32> to vector<8x8xf32>
    %96 = vector.broadcast %94 : vector<1x8xf32> to vector<8x8xf32>
    %97 = arith.mulf %95, %96 : vector<8x8xf32>
    %98 = arith.index_cast %c1_i32 : i32 to index
    %c0_35 = arith.constant 0 : index
    %99 = vector.load %arg11[%98, %c0_35] : memref<8x8xf32, #tpu.memory_space<vmem>>, vector<1x8xf32>
    %100 = arith.index_cast %c1_i32 : i32 to index
    %c0_36 = arith.constant 0 : index
    %101 = vector.load %arg12[%100, %c0_36] : memref<8x8xf32, #tpu.memory_space<vmem>>, vector<1x8xf32>
    %102 = arith.index_cast %c1_i32 : i32 to index
    %c0_37 = arith.constant 0 : index
    %103 = vector.load %arg9[%102, %c0_37] : memref<8x32xf32, #tpu.memory_space<vmem>>, vector<1x32xf32>
    %104 = arith.index_cast %c1_i32 : i32 to index
    %c0_38 = arith.constant 0 : index
    %105 = vector.load %arg10[%104, %c0_38] : memref<8x32xf32, #tpu.memory_space<vmem>>, vector<1x32xf32>
    %cst_39 = arith.constant 0.000000e+00 : f32
    %106 = arith.subf %cst_39, %cst_20 : f32
    %cst_40 = arith.constant dense<0.000000e+00> : vector<8x1xf32>
    %107 = tpu.matmul %13, %103, %cst_40 {dimension_numbers = #tpu.dot_dimension_numbers<[1], [1], [0], [0], [0, 0, 1, 0], [], []>} : vector<8x32xf32>, vector<1x32xf32>, vector<8x1xf32> -> vector<8x1xf32>
    %108 = vector.broadcast %106 : f32 to vector<8x1xf32>
    %109 = arith.mulf %108, %107 : vector<8x1xf32>
    %110 = math.exp %109 : vector<8x1xf32>
    %cst_41 = arith.constant 0.000000e+00 : f32
    %111 = arith.subf %cst_41, %cst_20 : f32
    %cst_42 = arith.constant dense<0.000000e+00> : vector<8x1xf32>
    %112 = tpu.matmul %7, %105, %cst_42 {dimension_numbers = #tpu.dot_dimension_numbers<[1], [1], [0], [0], [0, 0, 1, 0], [], []>} : vector<8x32xf32>, vector<1x32xf32>, vector<8x1xf32> -> vector<8x1xf32>
    %113 = vector.broadcast %111 : f32 to vector<8x1xf32>
    %114 = arith.mulf %113, %112 : vector<8x1xf32>
    %115 = math.exp %114 : vector<8x1xf32>
    %116 = vector.broadcast %110 : vector<8x1xf32> to vector<8x8xf32>
    %117 = vector.broadcast %99 : vector<1x8xf32> to vector<8x8xf32>
    %118 = arith.mulf %116, %117 : vector<8x8xf32>
    %cst_43 = arith.constant 1.000000e+00 : f32
    %119 = vector.broadcast %cst_43 : f32 to vector<8x8xf32>
    %120 = arith.addf %119, %118 : vector<8x8xf32>
    %121 = math.log %120 : vector<8x8xf32>
    %122 = vector.broadcast %115 : vector<8x1xf32> to vector<8x8xf32>
    %123 = vector.broadcast %101 : vector<1x8xf32> to vector<8x8xf32>
    %124 = arith.mulf %122, %123 : vector<8x8xf32>
    %cst_44 = arith.constant 1.000000e+00 : f32
    %125 = vector.broadcast %cst_44 : f32 to vector<8x8xf32>
    %126 = arith.addf %125, %124 : vector<8x8xf32>
    %127 = math.log %126 : vector<8x8xf32>
    %128 = arith.addf %121, %127 : vector<8x8xf32>
    %129 = arith.mulf %97, %128 : vector<8x8xf32>
    %130 = vector.shape_cast %129 : vector<8x8xf32> to vector<1x8x8xf32>
    %cst_45 = arith.constant dense<0.000000e+00> : vector<1xf32>
    %131 = vector.multi_reduction <add>, %130, %cst_45 [1, 2] : vector<1x8x8xf32> to vector<1xf32>
    %132 = vector.shape_cast %131 : vector<1xf32> to vector<1x1x1xf32>
    %133 = vector.extract %132[0, 0, 0] : f32 from vector<1x1x1xf32>
    %134 = arith.index_cast %c1_i32 : i32 to index
    %135 = memref.load %arg5[%134] : memref<8xf32, #tpu.memory_space<smem>>
    %136 = arith.mulf %133, %135 : f32
    %137 = arith.addf %82, %136 : f32
    %c2_i32 = arith.constant 2 : i32
    %138 = arith.index_cast %c2_i32 : i32 to index
    %139 = memref.load %arg4[%138] : memref<8xi32, #tpu.memory_space<smem>>
    %140 = vector.broadcast %139 : i32 to vector<8x1xi32>
    %141 = arith.cmpi eq, %26, %140 : vector<8x1xi32>
    %142 = arith.extui %141 : vector<8x1xi1> to vector<8x1xi32>
    %143 = arith.sitofp %142 : vector<8x1xi32> to vector<8x1xf32>
    %144 = vector.broadcast %139 : i32 to vector<1x8xi32>
    %145 = arith.cmpi eq, %27, %144 : vector<1x8xi32>
    %146 = arith.extui %145 : vector<1x8xi1> to vector<1x8xi32>
    %147 = arith.sitofp %146 : vector<1x8xi32> to vector<1x8xf32>
    %cst_46 = arith.constant 1.000000e+00 : f32
    %148 = vector.broadcast %cst_46 : f32 to vector<1x8xf32>
    %149 = arith.subf %148, %147 : vector<1x8xf32>
    %150 = vector.broadcast %143 : vector<8x1xf32> to vector<8x8xf32>
    %151 = vector.broadcast %149 : vector<1x8xf32> to vector<8x8xf32>
    %152 = arith.mulf %150, %151 : vector<8x8xf32>
    %153 = arith.index_cast %c2_i32 : i32 to index
    %c0_47 = arith.constant 0 : index
    %154 = vector.load %arg11[%153, %c0_47] : memref<8x8xf32, #tpu.memory_space<vmem>>, vector<1x8xf32>
    %155 = arith.index_cast %c2_i32 : i32 to index
    %c0_48 = arith.constant 0 : index
    %156 = vector.load %arg12[%155, %c0_48] : memref<8x8xf32, #tpu.memory_space<vmem>>, vector<1x8xf32>
    %157 = arith.index_cast %c2_i32 : i32 to index
    %c0_49 = arith.constant 0 : index
    %158 = vector.load %arg9[%157, %c0_49] : memref<8x32xf32, #tpu.memory_space<vmem>>, vector<1x32xf32>
    %159 = arith.index_cast %c2_i32 : i32 to index
    %c0_50 = arith.constant 0 : index
    %160 = vector.load %arg10[%159, %c0_50] : memref<8x32xf32, #tpu.memory_space<vmem>>, vector<1x32xf32>
    %cst_51 = arith.constant 0.000000e+00 : f32
    %161 = arith.subf %cst_51, %cst_20 : f32
    %cst_52 = arith.constant dense<0.000000e+00> : vector<8x1xf32>
    %162 = tpu.matmul %13, %158, %cst_52 {dimension_numbers = #tpu.dot_dimension_numbers<[1], [1], [0], [0], [0, 0, 1, 0], [], []>} : vector<8x32xf32>, vector<1x32xf32>, vector<8x1xf32> -> vector<8x1xf32>
    %163 = vector.broadcast %161 : f32 to vector<8x1xf32>
    %164 = arith.mulf %163, %162 : vector<8x1xf32>
    %165 = math.exp %164 : vector<8x1xf32>
    %cst_53 = arith.constant 0.000000e+00 : f32
    %166 = arith.subf %cst_53, %cst_20 : f32
    %cst_54 = arith.constant dense<0.000000e+00> : vector<8x1xf32>
    %167 = tpu.matmul %7, %160, %cst_54 {dimension_numbers = #tpu.dot_dimension_numbers<[1], [1], [0], [0], [0, 0, 1, 0], [], []>} : vector<8x32xf32>, vector<1x32xf32>, vector<8x1xf32> -> vector<8x1xf32>
    %168 = vector.broadcast %166 : f32 to vector<8x1xf32>
    %169 = arith.mulf %168, %167 : vector<8x1xf32>
    %170 = math.exp %169 : vector<8x1xf32>
    %171 = vector.broadcast %165 : vector<8x1xf32> to vector<8x8xf32>
    %172 = vector.broadcast %154 : vector<1x8xf32> to vector<8x8xf32>
    %173 = arith.mulf %171, %172 : vector<8x8xf32>
    %cst_55 = arith.constant 1.000000e+00 : f32
    %174 = vector.broadcast %cst_55 : f32 to vector<8x8xf32>
    %175 = arith.addf %174, %173 : vector<8x8xf32>
    %176 = math.log %175 : vector<8x8xf32>
    %177 = vector.broadcast %170 : vector<8x1xf32> to vector<8x8xf32>
    %178 = vector.broadcast %156 : vector<1x8xf32> to vector<8x8xf32>
    %179 = arith.mulf %177, %178 : vector<8x8xf32>
    %cst_56 = arith.constant 1.000000e+00 : f32
    %180 = vector.broadcast %cst_56 : f32 to vector<8x8xf32>
    %181 = arith.addf %180, %179 : vector<8x8xf32>
    %182 = math.log %181 : vector<8x8xf32>
    %183 = arith.addf %176, %182 : vector<8x8xf32>
    %184 = arith.mulf %152, %183 : vector<8x8xf32>
    %185 = vector.shape_cast %184 : vector<8x8xf32> to vector<1x8x8xf32>
    %cst_57 = arith.constant dense<0.000000e+00> : vector<1xf32>
    %186 = vector.multi_reduction <add>, %185, %cst_57 [1, 2] : vector<1x8x8xf32> to vector<1xf32>
    %187 = vector.shape_cast %186 : vector<1xf32> to vector<1x1x1xf32>
    %188 = vector.extract %187[0, 0, 0] : f32 from vector<1x1x1xf32>
    %189 = arith.index_cast %c2_i32 : i32 to index
    %190 = memref.load %arg5[%189] : memref<8xf32, #tpu.memory_space<smem>>
    %191 = arith.mulf %188, %190 : f32
    %192 = arith.addf %137, %191 : f32
    %c3_i32 = arith.constant 3 : i32
    %193 = arith.index_cast %c3_i32 : i32 to index
    %194 = memref.load %arg4[%193] : memref<8xi32, #tpu.memory_space<smem>>
    %195 = vector.broadcast %194 : i32 to vector<8x1xi32>
    %196 = arith.cmpi eq, %26, %195 : vector<8x1xi32>
    %197 = arith.extui %196 : vector<8x1xi1> to vector<8x1xi32>
    %198 = arith.sitofp %197 : vector<8x1xi32> to vector<8x1xf32>
    %199 = vector.broadcast %194 : i32 to vector<1x8xi32>
    %200 = arith.cmpi eq, %27, %199 : vector<1x8xi32>
    %201 = arith.extui %200 : vector<1x8xi1> to vector<1x8xi32>
    %202 = arith.sitofp %201 : vector<1x8xi32> to vector<1x8xf32>
    %cst_58 = arith.constant 1.000000e+00 : f32
    %203 = vector.broadcast %cst_58 : f32 to vector<1x8xf32>
    %204 = arith.subf %203, %202 : vector<1x8xf32>
    %205 = vector.broadcast %198 : vector<8x1xf32> to vector<8x8xf32>
    %206 = vector.broadcast %204 : vector<1x8xf32> to vector<8x8xf32>
    %207 = arith.mulf %205, %206 : vector<8x8xf32>
    %208 = arith.index_cast %c3_i32 : i32 to index
    %c0_59 = arith.constant 0 : index
    %209 = vector.load %arg11[%208, %c0_59] : memref<8x8xf32, #tpu.memory_space<vmem>>, vector<1x8xf32>
    %210 = arith.index_cast %c3_i32 : i32 to index
    %c0_60 = arith.constant 0 : index
    %211 = vector.load %arg12[%210, %c0_60] : memref<8x8xf32, #tpu.memory_space<vmem>>, vector<1x8xf32>
    %212 = arith.index_cast %c3_i32 : i32 to index
    %c0_61 = arith.constant 0 : index
    %213 = vector.load %arg9[%212, %c0_61] : memref<8x32xf32, #tpu.memory_space<vmem>>, vector<1x32xf32>
    %214 = arith.index_cast %c3_i32 : i32 to index
    %c0_62 = arith.constant 0 : index
    %215 = vector.load %arg10[%214, %c0_62] : memref<8x32xf32, #tpu.memory_space<vmem>>, vector<1x32xf32>
    %cst_63 = arith.constant 0.000000e+00 : f32
    %216 = arith.subf %cst_63, %cst_20 : f32
    %cst_64 = arith.constant dense<0.000000e+00> : vector<8x1xf32>
    %217 = tpu.matmul %13, %213, %cst_64 {dimension_numbers = #tpu.dot_dimension_numbers<[1], [1], [0], [0], [0, 0, 1, 0], [], []>} : vector<8x32xf32>, vector<1x32xf32>, vector<8x1xf32> -> vector<8x1xf32>
    %218 = vector.broadcast %216 : f32 to vector<8x1xf32>
    %219 = arith.mulf %218, %217 : vector<8x1xf32>
    %220 = math.exp %219 : vector<8x1xf32>
    %cst_65 = arith.constant 0.000000e+00 : f32
    %221 = arith.subf %cst_65, %cst_20 : f32
    %cst_66 = arith.constant dense<0.000000e+00> : vector<8x1xf32>
    %222 = tpu.matmul %7, %215, %cst_66 {dimension_numbers = #tpu.dot_dimension_numbers<[1], [1], [0], [0], [0, 0, 1, 0], [], []>} : vector<8x32xf32>, vector<1x32xf32>, vector<8x1xf32> -> vector<8x1xf32>
    %223 = vector.broadcast %221 : f32 to vector<8x1xf32>
    %224 = arith.mulf %223, %222 : vector<8x1xf32>
    %225 = math.exp %224 : vector<8x1xf32>
    %226 = vector.broadcast %220 : vector<8x1xf32> to vector<8x8xf32>
    %227 = vector.broadcast %209 : vector<1x8xf32> to vector<8x8xf32>
    %228 = arith.mulf %226, %227 : vector<8x8xf32>
    %cst_67 = arith.constant 1.000000e+00 : f32
    %229 = vector.broadcast %cst_67 : f32 to vector<8x8xf32>
    %230 = arith.addf %229, %228 : vector<8x8xf32>
    %231 = math.log %230 : vector<8x8xf32>
    %232 = vector.broadcast %225 : vector<8x1xf32> to vector<8x8xf32>
    %233 = vector.broadcast %211 : vector<1x8xf32> to vector<8x8xf32>
    %234 = arith.mulf %232, %233 : vector<8x8xf32>
    %cst_68 = arith.constant 1.000000e+00 : f32
    %235 = vector.broadcast %cst_68 : f32 to vector<8x8xf32>
    %236 = arith.addf %235, %234 : vector<8x8xf32>
    %237 = math.log %236 : vector<8x8xf32>
    %238 = arith.addf %231, %237 : vector<8x8xf32>
    %239 = arith.mulf %207, %238 : vector<8x8xf32>
    %240 = vector.shape_cast %239 : vector<8x8xf32> to vector<1x8x8xf32>
    %cst_69 = arith.constant dense<0.000000e+00> : vector<1xf32>
    %241 = vector.multi_reduction <add>, %240, %cst_69 [1, 2] : vector<1x8x8xf32> to vector<1xf32>
    %242 = vector.shape_cast %241 : vector<1xf32> to vector<1x1x1xf32>
    %243 = vector.extract %242[0, 0, 0] : f32 from vector<1x1x1xf32>
    %244 = arith.index_cast %c3_i32 : i32 to index
    %245 = memref.load %arg5[%244] : memref<8xf32, #tpu.memory_space<smem>>
    %246 = arith.mulf %243, %245 : f32
    %247 = arith.addf %192, %246 : f32
    %c4_i32 = arith.constant 4 : i32
    %248 = arith.index_cast %c4_i32 : i32 to index
    %249 = memref.load %arg4[%248] : memref<8xi32, #tpu.memory_space<smem>>
    %250 = vector.broadcast %249 : i32 to vector<8x1xi32>
    %251 = arith.cmpi eq, %26, %250 : vector<8x1xi32>
    %252 = arith.extui %251 : vector<8x1xi1> to vector<8x1xi32>
    %253 = arith.sitofp %252 : vector<8x1xi32> to vector<8x1xf32>
    %254 = vector.broadcast %249 : i32 to vector<1x8xi32>
    %255 = arith.cmpi eq, %27, %254 : vector<1x8xi32>
    %256 = arith.extui %255 : vector<1x8xi1> to vector<1x8xi32>
    %257 = arith.sitofp %256 : vector<1x8xi32> to vector<1x8xf32>
    %cst_70 = arith.constant 1.000000e+00 : f32
    %258 = vector.broadcast %cst_70 : f32 to vector<1x8xf32>
    %259 = arith.subf %258, %257 : vector<1x8xf32>
    %260 = vector.broadcast %253 : vector<8x1xf32> to vector<8x8xf32>
    %261 = vector.broadcast %259 : vector<1x8xf32> to vector<8x8xf32>
    %262 = arith.mulf %260, %261 : vector<8x8xf32>
    %263 = arith.index_cast %c4_i32 : i32 to index
    %c0_71 = arith.constant 0 : index
    %264 = vector.load %arg11[%263, %c0_71] : memref<8x8xf32, #tpu.memory_space<vmem>>, vector<1x8xf32>
    %265 = arith.index_cast %c4_i32 : i32 to index
    %c0_72 = arith.constant 0 : index
    %266 = vector.load %arg12[%265, %c0_72] : memref<8x8xf32, #tpu.memory_space<vmem>>, vector<1x8xf32>
    %267 = arith.index_cast %c4_i32 : i32 to index
    %c0_73 = arith.constant 0 : index
    %268 = vector.load %arg9[%267, %c0_73] : memref<8x32xf32, #tpu.memory_space<vmem>>, vector<1x32xf32>
    %269 = arith.index_cast %c4_i32 : i32 to index
    %c0_74 = arith.constant 0 : index
    %270 = vector.load %arg10[%269, %c0_74] : memref<8x32xf32, #tpu.memory_space<vmem>>, vector<1x32xf32>
    %cst_75 = arith.constant 0.000000e+00 : f32
    %271 = arith.subf %cst_75, %cst_20 : f32
    %cst_76 = arith.constant dense<0.000000e+00> : vector<8x1xf32>
    %272 = tpu.matmul %13, %268, %cst_76 {dimension_numbers = #tpu.dot_dimension_numbers<[1], [1], [0], [0], [0, 0, 1, 0], [], []>} : vector<8x32xf32>, vector<1x32xf32>, vector<8x1xf32> -> vector<8x1xf32>
    %273 = vector.broadcast %271 : f32 to vector<8x1xf32>
    %274 = arith.mulf %273, %272 : vector<8x1xf32>
    %275 = math.exp %274 : vector<8x1xf32>
    %cst_77 = arith.constant 0.000000e+00 : f32
    %276 = arith.subf %cst_77, %cst_20 : f32
    %cst_78 = arith.constant dense<0.000000e+00> : vector<8x1xf32>
    %277 = tpu.matmul %7, %270, %cst_78 {dimension_numbers = #tpu.dot_dimension_numbers<[1], [1], [0], [0], [0, 0, 1, 0], [], []>} : vector<8x32xf32>, vector<1x32xf32>, vector<8x1xf32> -> vector<8x1xf32>
    %278 = vector.broadcast %276 : f32 to vector<8x1xf32>
    %279 = arith.mulf %278, %277 : vector<8x1xf32>
    %280 = math.exp %279 : vector<8x1xf32>
    %281 = vector.broadcast %275 : vector<8x1xf32> to vector<8x8xf32>
    %282 = vector.broadcast %264 : vector<1x8xf32> to vector<8x8xf32>
    %283 = arith.mulf %281, %282 : vector<8x8xf32>
    %cst_79 = arith.constant 1.000000e+00 : f32
    %284 = vector.broadcast %cst_79 : f32 to vector<8x8xf32>
    %285 = arith.addf %284, %283 : vector<8x8xf32>
    %286 = math.log %285 : vector<8x8xf32>
    %287 = vector.broadcast %280 : vector<8x1xf32> to vector<8x8xf32>
    %288 = vector.broadcast %266 : vector<1x8xf32> to vector<8x8xf32>
    %289 = arith.mulf %287, %288 : vector<8x8xf32>
    %cst_80 = arith.constant 1.000000e+00 : f32
    %290 = vector.broadcast %cst_80 : f32 to vector<8x8xf32>
    %291 = arith.addf %290, %289 : vector<8x8xf32>
    %292 = math.log %291 : vector<8x8xf32>
    %293 = arith.addf %286, %292 : vector<8x8xf32>
    %294 = arith.mulf %262, %293 : vector<8x8xf32>
    %295 = vector.shape_cast %294 : vector<8x8xf32> to vector<1x8x8xf32>
    %cst_81 = arith.constant dense<0.000000e+00> : vector<1xf32>
    %296 = vector.multi_reduction <add>, %295, %cst_81 [1, 2] : vector<1x8x8xf32> to vector<1xf32>
    %297 = vector.shape_cast %296 : vector<1xf32> to vector<1x1x1xf32>
    %298 = vector.extract %297[0, 0, 0] : f32 from vector<1x1x1xf32>
    %299 = arith.index_cast %c4_i32 : i32 to index
    %300 = memref.load %arg5[%299] : memref<8xf32, #tpu.memory_space<smem>>
    %301 = arith.mulf %298, %300 : f32
    %302 = arith.addf %247, %301 : f32
    %c5_i32 = arith.constant 5 : i32
    %303 = arith.index_cast %c5_i32 : i32 to index
    %304 = memref.load %arg4[%303] : memref<8xi32, #tpu.memory_space<smem>>
    %305 = vector.broadcast %304 : i32 to vector<8x1xi32>
    %306 = arith.cmpi eq, %26, %305 : vector<8x1xi32>
    %307 = arith.extui %306 : vector<8x1xi1> to vector<8x1xi32>
    %308 = arith.sitofp %307 : vector<8x1xi32> to vector<8x1xf32>
    %309 = vector.broadcast %304 : i32 to vector<1x8xi32>
    %310 = arith.cmpi eq, %27, %309 : vector<1x8xi32>
    %311 = arith.extui %310 : vector<1x8xi1> to vector<1x8xi32>
    %312 = arith.sitofp %311 : vector<1x8xi32> to vector<1x8xf32>
    %cst_82 = arith.constant 1.000000e+00 : f32
    %313 = vector.broadcast %cst_82 : f32 to vector<1x8xf32>
    %314 = arith.subf %313, %312 : vector<1x8xf32>
    %315 = vector.broadcast %308 : vector<8x1xf32> to vector<8x8xf32>
    %316 = vector.broadcast %314 : vector<1x8xf32> to vector<8x8xf32>
    %317 = arith.mulf %315, %316 : vector<8x8xf32>
    %318 = arith.index_cast %c5_i32 : i32 to index
    %c0_83 = arith.constant 0 : index
    %319 = vector.load %arg11[%318, %c0_83] : memref<8x8xf32, #tpu.memory_space<vmem>>, vector<1x8xf32>
    %320 = arith.index_cast %c5_i32 : i32 to index
    %c0_84 = arith.constant 0 : index
    %321 = vector.load %arg12[%320, %c0_84] : memref<8x8xf32, #tpu.memory_space<vmem>>, vector<1x8xf32>
    %322 = arith.index_cast %c5_i32 : i32 to index
    %c0_85 = arith.constant 0 : index
    %323 = vector.load %arg9[%322, %c0_85] : memref<8x32xf32, #tpu.memory_space<vmem>>, vector<1x32xf32>
    %324 = arith.index_cast %c5_i32 : i32 to index
    %c0_86 = arith.constant 0 : index
    %325 = vector.load %arg10[%324, %c0_86] : memref<8x32xf32, #tpu.memory_space<vmem>>, vector<1x32xf32>
    %cst_87 = arith.constant 0.000000e+00 : f32
    %326 = arith.subf %cst_87, %cst_20 : f32
    %cst_88 = arith.constant dense<0.000000e+00> : vector<8x1xf32>
    %327 = tpu.matmul %13, %323, %cst_88 {dimension_numbers = #tpu.dot_dimension_numbers<[1], [1], [0], [0], [0, 0, 1, 0], [], []>} : vector<8x32xf32>, vector<1x32xf32>, vector<8x1xf32> -> vector<8x1xf32>
    %328 = vector.broadcast %326 : f32 to vector<8x1xf32>
    %329 = arith.mulf %328, %327 : vector<8x1xf32>
    %330 = math.exp %329 : vector<8x1xf32>
    %cst_89 = arith.constant 0.000000e+00 : f32
    %331 = arith.subf %cst_89, %cst_20 : f32
    %cst_90 = arith.constant dense<0.000000e+00> : vector<8x1xf32>
    %332 = tpu.matmul %7, %325, %cst_90 {dimension_numbers = #tpu.dot_dimension_numbers<[1], [1], [0], [0], [0, 0, 1, 0], [], []>} : vector<8x32xf32>, vector<1x32xf32>, vector<8x1xf32> -> vector<8x1xf32>
    %333 = vector.broadcast %331 : f32 to vector<8x1xf32>
    %334 = arith.mulf %333, %332 : vector<8x1xf32>
    %335 = math.exp %334 : vector<8x1xf32>
    %336 = vector.broadcast %330 : vector<8x1xf32> to vector<8x8xf32>
    %337 = vector.broadcast %319 : vector<1x8xf32> to vector<8x8xf32>
    %338 = arith.mulf %336, %337 : vector<8x8xf32>
    %cst_91 = arith.constant 1.000000e+00 : f32
    %339 = vector.broadcast %cst_91 : f32 to vector<8x8xf32>
    %340 = arith.addf %339, %338 : vector<8x8xf32>
    %341 = math.log %340 : vector<8x8xf32>
    %342 = vector.broadcast %335 : vector<8x1xf32> to vector<8x8xf32>
    %343 = vector.broadcast %321 : vector<1x8xf32> to vector<8x8xf32>
    %344 = arith.mulf %342, %343 : vector<8x8xf32>
    %cst_92 = arith.constant 1.000000e+00 : f32
    %345 = vector.broadcast %cst_92 : f32 to vector<8x8xf32>
    %346 = arith.addf %345, %344 : vector<8x8xf32>
    %347 = math.log %346 : vector<8x8xf32>
    %348 = arith.addf %341, %347 : vector<8x8xf32>
    %349 = arith.mulf %317, %348 : vector<8x8xf32>
    %350 = vector.shape_cast %349 : vector<8x8xf32> to vector<1x8x8xf32>
    %cst_93 = arith.constant dense<0.000000e+00> : vector<1xf32>
    %351 = vector.multi_reduction <add>, %350, %cst_93 [1, 2] : vector<1x8x8xf32> to vector<1xf32>
    %352 = vector.shape_cast %351 : vector<1xf32> to vector<1x1x1xf32>
    %353 = vector.extract %352[0, 0, 0] : f32 from vector<1x1x1xf32>
    %354 = arith.index_cast %c5_i32 : i32 to index
    %355 = memref.load %arg5[%354] : memref<8xf32, #tpu.memory_space<smem>>
    %356 = arith.mulf %353, %355 : f32
    %357 = arith.addf %302, %356 : f32
    %c6_i32 = arith.constant 6 : i32
    %358 = arith.index_cast %c6_i32 : i32 to index
    %359 = memref.load %arg4[%358] : memref<8xi32, #tpu.memory_space<smem>>
    %360 = vector.broadcast %359 : i32 to vector<8x1xi32>
    %361 = arith.cmpi eq, %26, %360 : vector<8x1xi32>
    %362 = arith.extui %361 : vector<8x1xi1> to vector<8x1xi32>
    %363 = arith.sitofp %362 : vector<8x1xi32> to vector<8x1xf32>
    %364 = vector.broadcast %359 : i32 to vector<1x8xi32>
    %365 = arith.cmpi eq, %27, %364 : vector<1x8xi32>
    %366 = arith.extui %365 : vector<1x8xi1> to vector<1x8xi32>
    %367 = arith.sitofp %366 : vector<1x8xi32> to vector<1x8xf32>
    %cst_94 = arith.constant 1.000000e+00 : f32
    %368 = vector.broadcast %cst_94 : f32 to vector<1x8xf32>
    %369 = arith.subf %368, %367 : vector<1x8xf32>
    %370 = vector.broadcast %363 : vector<8x1xf32> to vector<8x8xf32>
    %371 = vector.broadcast %369 : vector<1x8xf32> to vector<8x8xf32>
    %372 = arith.mulf %370, %371 : vector<8x8xf32>
    %373 = arith.index_cast %c6_i32 : i32 to index
    %c0_95 = arith.constant 0 : index
    %374 = vector.load %arg11[%373, %c0_95] : memref<8x8xf32, #tpu.memory_space<vmem>>, vector<1x8xf32>
    %375 = arith.index_cast %c6_i32 : i32 to index
    %c0_96 = arith.constant 0 : index
    %376 = vector.load %arg12[%375, %c0_96] : memref<8x8xf32, #tpu.memory_space<vmem>>, vector<1x8xf32>
    %377 = arith.index_cast %c6_i32 : i32 to index
    %c0_97 = arith.constant 0 : index
    %378 = vector.load %arg9[%377, %c0_97] : memref<8x32xf32, #tpu.memory_space<vmem>>, vector<1x32xf32>
    %379 = arith.index_cast %c6_i32 : i32 to index
    %c0_98 = arith.constant 0 : index
    %380 = vector.load %arg10[%379, %c0_98] : memref<8x32xf32, #tpu.memory_space<vmem>>, vector<1x32xf32>
    %cst_99 = arith.constant 0.000000e+00 : f32
    %381 = arith.subf %cst_99, %cst_20 : f32
    %cst_100 = arith.constant dense<0.000000e+00> : vector<8x1xf32>
    %382 = tpu.matmul %13, %378, %cst_100 {dimension_numbers = #tpu.dot_dimension_numbers<[1], [1], [0], [0], [0, 0, 1, 0], [], []>} : vector<8x32xf32>, vector<1x32xf32>, vector<8x1xf32> -> vector<8x1xf32>
    %383 = vector.broadcast %381 : f32 to vector<8x1xf32>
    %384 = arith.mulf %383, %382 : vector<8x1xf32>
    %385 = math.exp %384 : vector<8x1xf32>
    %cst_101 = arith.constant 0.000000e+00 : f32
    %386 = arith.subf %cst_101, %cst_20 : f32
    %cst_102 = arith.constant dense<0.000000e+00> : vector<8x1xf32>
    %387 = tpu.matmul %7, %380, %cst_102 {dimension_numbers = #tpu.dot_dimension_numbers<[1], [1], [0], [0], [0, 0, 1, 0], [], []>} : vector<8x32xf32>, vector<1x32xf32>, vector<8x1xf32> -> vector<8x1xf32>
    %388 = vector.broadcast %386 : f32 to vector<8x1xf32>
    %389 = arith.mulf %388, %387 : vector<8x1xf32>
    %390 = math.exp %389 : vector<8x1xf32>
    %391 = vector.broadcast %385 : vector<8x1xf32> to vector<8x8xf32>
    %392 = vector.broadcast %374 : vector<1x8xf32> to vector<8x8xf32>
    %393 = arith.mulf %391, %392 : vector<8x8xf32>
    %cst_103 = arith.constant 1.000000e+00 : f32
    %394 = vector.broadcast %cst_103 : f32 to vector<8x8xf32>
    %395 = arith.addf %394, %393 : vector<8x8xf32>
    %396 = math.log %395 : vector<8x8xf32>
    %397 = vector.broadcast %390 : vector<8x1xf32> to vector<8x8xf32>
    %398 = vector.broadcast %376 : vector<1x8xf32> to vector<8x8xf32>
    %399 = arith.mulf %397, %398 : vector<8x8xf32>
    %cst_104 = arith.constant 1.000000e+00 : f32
    %400 = vector.broadcast %cst_104 : f32 to vector<8x8xf32>
    %401 = arith.addf %400, %399 : vector<8x8xf32>
    %402 = math.log %401 : vector<8x8xf32>
    %403 = arith.addf %396, %402 : vector<8x8xf32>
    %404 = arith.mulf %372, %403 : vector<8x8xf32>
    %405 = vector.shape_cast %404 : vector<8x8xf32> to vector<1x8x8xf32>
    %cst_105 = arith.constant dense<0.000000e+00> : vector<1xf32>
    %406 = vector.multi_reduction <add>, %405, %cst_105 [1, 2] : vector<1x8x8xf32> to vector<1xf32>
    %407 = vector.shape_cast %406 : vector<1xf32> to vector<1x1x1xf32>
    %408 = vector.extract %407[0, 0, 0] : f32 from vector<1x1x1xf32>
    %409 = arith.index_cast %c6_i32 : i32 to index
    %410 = memref.load %arg5[%409] : memref<8xf32, #tpu.memory_space<smem>>
    %411 = arith.mulf %408, %410 : f32
    %412 = arith.addf %357, %411 : f32
    %c7_i32 = arith.constant 7 : i32
    %413 = arith.index_cast %c7_i32 : i32 to index
    %414 = memref.load %arg4[%413] : memref<8xi32, #tpu.memory_space<smem>>
    %415 = vector.broadcast %414 : i32 to vector<8x1xi32>
    %416 = arith.cmpi eq, %26, %415 : vector<8x1xi32>
    %417 = arith.extui %416 : vector<8x1xi1> to vector<8x1xi32>
    %418 = arith.sitofp %417 : vector<8x1xi32> to vector<8x1xf32>
    %419 = vector.broadcast %414 : i32 to vector<1x8xi32>
    %420 = arith.cmpi eq, %27, %419 : vector<1x8xi32>
    %421 = arith.extui %420 : vector<1x8xi1> to vector<1x8xi32>
    %422 = arith.sitofp %421 : vector<1x8xi32> to vector<1x8xf32>
    %cst_106 = arith.constant 1.000000e+00 : f32
    %423 = vector.broadcast %cst_106 : f32 to vector<1x8xf32>
    %424 = arith.subf %423, %422 : vector<1x8xf32>
    %425 = vector.broadcast %418 : vector<8x1xf32> to vector<8x8xf32>
    %426 = vector.broadcast %424 : vector<1x8xf32> to vector<8x8xf32>
    %427 = arith.mulf %425, %426 : vector<8x8xf32>
    %428 = arith.index_cast %c7_i32 : i32 to index
    %c0_107 = arith.constant 0 : index
    %429 = vector.load %arg11[%428, %c0_107] : memref<8x8xf32, #tpu.memory_space<vmem>>, vector<1x8xf32>
    %430 = arith.index_cast %c7_i32 : i32 to index
    %c0_108 = arith.constant 0 : index
    %431 = vector.load %arg12[%430, %c0_108] : memref<8x8xf32, #tpu.memory_space<vmem>>, vector<1x8xf32>
    %432 = arith.index_cast %c7_i32 : i32 to index
    %c0_109 = arith.constant 0 : index
    %433 = vector.load %arg9[%432, %c0_109] : memref<8x32xf32, #tpu.memory_space<vmem>>, vector<1x32xf32>
    %434 = arith.index_cast %c7_i32 : i32 to index
    %c0_110 = arith.constant 0 : index
    %435 = vector.load %arg10[%434, %c0_110] : memref<8x32xf32, #tpu.memory_space<vmem>>, vector<1x32xf32>
    %cst_111 = arith.constant 0.000000e+00 : f32
    %436 = arith.subf %cst_111, %cst_20 : f32
    %cst_112 = arith.constant dense<0.000000e+00> : vector<8x1xf32>
    %437 = tpu.matmul %13, %433, %cst_112 {dimension_numbers = #tpu.dot_dimension_numbers<[1], [1], [0], [0], [0, 0, 1, 0], [], []>} : vector<8x32xf32>, vector<1x32xf32>, vector<8x1xf32> -> vector<8x1xf32>
    %438 = vector.broadcast %436 : f32 to vector<8x1xf32>
    %439 = arith.mulf %438, %437 : vector<8x1xf32>
    %440 = math.exp %439 : vector<8x1xf32>
    %cst_113 = arith.constant 0.000000e+00 : f32
    %441 = arith.subf %cst_113, %cst_20 : f32
    %cst_114 = arith.constant dense<0.000000e+00> : vector<8x1xf32>
    %442 = tpu.matmul %7, %435, %cst_114 {dimension_numbers = #tpu.dot_dimension_numbers<[1], [1], [0], [0], [0, 0, 1, 0], [], []>} : vector<8x32xf32>, vector<1x32xf32>, vector<8x1xf32> -> vector<8x1xf32>
    %443 = vector.broadcast %441 : f32 to vector<8x1xf32>
    %444 = arith.mulf %443, %442 : vector<8x1xf32>
    %445 = math.exp %444 : vector<8x1xf32>
    %446 = vector.broadcast %440 : vector<8x1xf32> to vector<8x8xf32>
    %447 = vector.broadcast %429 : vector<1x8xf32> to vector<8x8xf32>
    %448 = arith.mulf %446, %447 : vector<8x8xf32>
    %cst_115 = arith.constant 1.000000e+00 : f32
    %449 = vector.broadcast %cst_115 : f32 to vector<8x8xf32>
    %450 = arith.addf %449, %448 : vector<8x8xf32>
    %451 = math.log %450 : vector<8x8xf32>
    %452 = vector.broadcast %445 : vector<8x1xf32> to vector<8x8xf32>
    %453 = vector.broadcast %431 : vector<1x8xf32> to vector<8x8xf32>
    %454 = arith.mulf %452, %453 : vector<8x8xf32>
    %cst_116 = arith.constant 1.000000e+00 : f32
    %455 = vector.broadcast %cst_116 : f32 to vector<8x8xf32>
    %456 = arith.addf %455, %454 : vector<8x8xf32>
    %457 = math.log %456 : vector<8x8xf32>
    %458 = arith.addf %451, %457 : vector<8x8xf32>
    %459 = arith.mulf %427, %458 : vector<8x8xf32>
    %460 = vector.shape_cast %459 : vector<8x8xf32> to vector<1x8x8xf32>
    %cst_117 = arith.constant dense<0.000000e+00> : vector<1xf32>
    %461 = vector.multi_reduction <add>, %460, %cst_117 [1, 2] : vector<1x8x8xf32> to vector<1xf32>
    %462 = vector.shape_cast %461 : vector<1xf32> to vector<1x1x1xf32>
    %463 = vector.extract %462[0, 0, 0] : f32 from vector<1x1x1xf32>
    %464 = arith.index_cast %c7_i32 : i32 to index
    %465 = memref.load %arg5[%464] : memref<8xf32, #tpu.memory_space<smem>>
    %466 = arith.mulf %463, %465 : f32
    %467 = arith.addf %412, %466 : f32
    %c8_i32 = arith.constant 8 : i32
    %cst_118 = arith.constant 1.600000e+01 : f32
    %468 = arith.divf %467, %cst_118 : f32
    %c0_119 = arith.constant 0 : index
    %c0_120 = arith.constant 0 : index
    %469 = memref.load %arg6[%c0_119, %c0_120] : memref<1x1xf32, #tpu.memory_space<smem>>
    memref.store %468, %arg6[%c0_119, %c0_120] : memref<1x1xf32, #tpu.memory_space<smem>>
    %c7 = arith.constant 7 : index
    %470 = memref.load %arg4[%c7] : memref<8xi32, #tpu.memory_space<smem>>
    %471 = vector.broadcast %470 : i32 to vector<1x8xi32>
    %472 = arith.cmpi eq, %27, %471 : vector<1x8xi32>
    %473 = arith.extui %472 : vector<1x8xi1> to vector<1x8xi32>
    %474 = arith.sitofp %473 : vector<1x8xi32> to vector<1x8xf32>
    %cst_121 = arith.constant 1.000000e+00 : f32
    %475 = vector.broadcast %cst_121 : f32 to vector<1x8xf32>
    %476 = arith.subf %475, %474 : vector<1x8xf32>
    %477 = vector.shape_cast %474 : vector<1x8xf32> to vector<1x1x8xf32>
    %cst_122 = arith.constant dense<0.000000e+00> : vector<1xf32>
    %478 = vector.multi_reduction <add>, %477, %cst_122 [1, 2] : vector<1x1x8xf32> to vector<1xf32>
    %479 = vector.shape_cast %478 : vector<1xf32> to vector<1x1x1xf32>
    %480 = vector.extract %479[0, 0, 0] : f32 from vector<1x1x1xf32>
    %cst_123 = arith.constant 8.000000e+00 : f32
    %481 = arith.subf %cst_123, %480 : f32
    %482 = vector.extract_strided_slice %16 {offsets = [7, 0], sizes = [1, 8], strides = [1, 1]} : vector<8x8xf32> to vector<1x8xf32>
    %483 = vector.extract_strided_slice %17 {offsets = [7, 0], sizes = [1, 8], strides = [1, 1]} : vector<8x8xf32> to vector<1x8xf32>
    %484 = arith.mulf %482, %474 : vector<1x8xf32>
    %485 = vector.shape_cast %484 : vector<1x8xf32> to vector<1x1x8xf32>
    %cst_124 = arith.constant dense<0.000000e+00> : vector<1xf32>
    %486 = vector.multi_reduction <add>, %485, %cst_124 [1, 2] : vector<1x1x8xf32> to vector<1xf32>
    %487 = vector.shape_cast %486 : vector<1xf32> to vector<1x1x1xf32>
    %488 = vector.extract %487[0, 0, 0] : f32 from vector<1x1x1xf32>
    %489 = arith.mulf %483, %474 : vector<1x8xf32>
    %490 = vector.shape_cast %489 : vector<1x8xf32> to vector<1x1x8xf32>
    %cst_125 = arith.constant dense<0.000000e+00> : vector<1xf32>
    %491 = vector.multi_reduction <add>, %490, %cst_125 [1, 2] : vector<1x1x8xf32> to vector<1xf32>
    %492 = vector.shape_cast %491 : vector<1xf32> to vector<1x1x1xf32>
    %493 = vector.extract %492[0, 0, 0] : f32 from vector<1x1x1xf32>
    %494 = arith.addf %488, %493 : f32
    %cst_126 = arith.constant 5.000000e-01 : f32
    %495 = arith.mulf %cst_126, %494 : f32
    %496 = arith.divf %495, %480 : f32
    %c0_127 = arith.constant 0 : index
    %c0_128 = arith.constant 0 : index
    %497 = memref.load %arg7[%c0_127, %c0_128] : memref<1x1xf32, #tpu.memory_space<smem>>
    memref.store %496, %arg7[%c0_127, %c0_128] : memref<1x1xf32, #tpu.memory_space<smem>>
    %498 = arith.mulf %482, %476 : vector<1x8xf32>
    %499 = vector.shape_cast %498 : vector<1x8xf32> to vector<1x1x8xf32>
    %cst_129 = arith.constant dense<0.000000e+00> : vector<1xf32>
    %500 = vector.multi_reduction <add>, %499, %cst_129 [1, 2] : vector<1x1x8xf32> to vector<1xf32>
    %501 = vector.shape_cast %500 : vector<1xf32> to vector<1x1x1xf32>
    %502 = vector.extract %501[0, 0, 0] : f32 from vector<1x1x1xf32>
    %503 = arith.mulf %483, %476 : vector<1x8xf32>
    %504 = vector.shape_cast %503 : vector<1x8xf32> to vector<1x1x8xf32>
    %cst_130 = arith.constant dense<0.000000e+00> : vector<1xf32>
    %505 = vector.multi_reduction <add>, %504, %cst_130 [1, 2] : vector<1x1x8xf32> to vector<1xf32>
    %506 = vector.shape_cast %505 : vector<1xf32> to vector<1x1x1xf32>
    %507 = vector.extract %506[0, 0, 0] : f32 from vector<1x1x1xf32>
    %508 = arith.addf %502, %507 : f32
    %cst_131 = arith.constant 5.000000e-01 : f32
    %509 = arith.mulf %cst_131, %508 : f32
    %510 = arith.divf %509, %481 : f32
    %c0_132 = arith.constant 0 : index
    %c0_133 = arith.constant 0 : index
    %511 = memref.load %arg8[%c0_132, %c0_133] : memref<1x1xf32, #tpu.memory_space<smem>>
    memref.store %510, %arg8[%c0_132, %c0_133] : memref<1x1xf32, #tpu.memory_space<smem>>
    return
  }
}

</mosaic_0001>

<llo_original>
// kernel: tpu_custom_call.1
$region0: #{tpu_custom_call.1}
  #allocation0 [shape = 'u32[]', space=smem, size = 0x4, offset = 0x4, fixed_abs, tag = 'smem constant byte address 0x4 - core index']
  #allocation1 [shape = 'u32[144,128]{1,0:T(1,128)}', space=vmem, size = 0x12000, scoped, tag = 'internal scratch']
  #allocation2 [shape = 'f32[8,32]{1,0:T(8,128)}', space=vmem, size = 0x1000, scoped, tag = 'scratch operand']
  #allocation3 [shape = 'f32[8,32]{1,0:T(8,128)}', space=vmem, size = 0x1000, scoped, tag = 'scratch operand']
  #allocation4 [shape = 'f32[8,8]{1,0:T(8,128)}', space=vmem, size = 0x1000, scoped, tag = 'scratch operand']
  #allocation5 [shape = 'f32[8,8]{1,0:T(8,128)}', space=vmem, size = 0x1000, scoped, tag = 'scratch operand']
  %s0 = inlined_call_operand.vmem [shape: f32[8,32], index: 0, kind: input, shape index: {}]
  %s1 = inlined_call_operand.hbm [shape: f32[8,32], index: 1, kind: input, shape index: {}]
  %s2 = inlined_call_operand.vmem [shape: s32[8,1], index: 2, kind: input, shape index: {}]
  %s3 = inlined_call_operand.vmem [shape: s32[1,8], index: 3, kind: input, shape index: {}]
  %s4 = inlined_call_operand.vmem [shape: s32[8], index: 4, kind: input, shape index: {}]
  %s5 = inlined_call_operand.vmem [shape: f32[8], index: 5, kind: input, shape index: {}]
  %s6 = inlined_call_operand.hbm [shape: f32[1,1], index: 6, kind: output, shape index: {0}]
  %s7 = inlined_call_operand.hbm [shape: f32[1,1], index: 7, kind: output, shape index: {1}]
  %s8 = inlined_call_operand.hbm [shape: f32[1,1], index: 8, kind: output, shape index: {2}]
  %9 = xla_tuple %s6, %s7, %s8
  %s10 = sld [smem:[#allocation0]]
  $region62: #{tpu_custom_call.1} parent=0
    _
  %s12 = ssub.s32 1, %s10
  %s13 = scalar_select 0, %s12, %s10
  $region1: #{tpu_custom_call.1} parent=0
    #allocation6 [shape = 'u8[4096]{0}', space=vmem, size = 0x1000, scoped, tag = 'input window, operand 1, single buffered']
    #allocation7 [shape = 's32[1]{0}', space=sflag, size = 0x4, scoped, tag = 'scoped memory for tpu_custom_call.1']
    #allocation8 [shape = 's32[1]{0}', space=sflag, size = 0x4, scoped, tag = 'scoped memory for tpu_custom_call.1']
    #allocation9 [shape = 's32[1]{0}', space=sflag, size = 0x4, scoped, tag = 'scoped memory for tpu_custom_call.1']
    #allocation10 [shape = 'u8[512]{0}', space=smem, size = 0x200, scoped, tag = 'input window, operand 4, single buffered']
    #allocation11 [shape = 'u8[512]{0}', space=smem, size = 0x200, scoped, tag = 'input window, operand 5, single buffered']
    #allocation12 [shape = 's32[1]{0}', space=sflag, size = 0x4, scoped, tag = 'scoped memory for tpu_custom_call.1']
    #allocation13 [shape = 'u8[512]{0}', space=smem, size = 0x200, scoped, tag = 'output window, operand 0, single buffered']
    #allocation14 [shape = 'u8[512]{0}', space=smem, size = 0x200, scoped, tag = 'output window, operand 1, single buffered']
    #allocation15 [shape = 's32[1]{0}', space=sflag, size = 0x4, scoped, tag = 'scoped memory for tpu_custom_call.1']
    #allocation16 [shape = 'u8[512]{0}', space=smem, size = 0x200, scoped, tag = 'output window, operand 2, single buffered']
    %14 = vsyncpa [#allocation7], 0
    %15 = vsyncpa [#allocation9], 0
    %16 = vsyncpa [#allocation12], 0
    %17 = vsyncpa [#allocation8], 0
    %18 = vsyncpa [#allocation15], 0
    // Predicated region
    $region2: #{tpu_custom_call.1} parent=1 // pred_check
      _
    $region3: #{tpu_custom_call.1} parent=1 // pred_check_branch
      %20 = sbr.rel (0) target = $region5
    $region4: #{tpu_custom_call.1} parent=1 // pred_region
      _
    $region5: #{tpu_custom_call.1} parent=1 // pred_fallthru
      _
    // Predicated region
    $region6: #{tpu_custom_call.1} parent=1 // pred_check
      _
    $region7: #{tpu_custom_call.1} parent=1 // pred_check_branch
      %22 = sbr.rel (0) target = $region9
    $region8: #{tpu_custom_call.1} parent=1 // pred_region
      %s24 = ssub.s32 128, 128
      %25 = vsyncadd [#allocation7], %s24
      %s27 = sshll.u32 [#allocation6], 4
      %s28 = int_to_ptr.vmem [resolvable:$true] %s27
      %30 = dma.hbm_to_vmem [thread:$0]  %s1, 128, %s28, [#allocation7]
    $region9: #{tpu_custom_call.1} parent=1 // pred_fallthru
      _
    // Predicated region
    $region10: #{tpu_custom_call.1} parent=1 // pred_check
      _
    $region11: #{tpu_custom_call.1} parent=1 // pred_check_branch
      %32 = sbr.rel (0) target = $region13
    $region12: #{tpu_custom_call.1} parent=1 // pred_region
      _
    $region13: #{tpu_custom_call.1} parent=1 // pred_fallthru
      _
    // Predicated region
    $region14: #{tpu_custom_call.1} parent=1 // pred_check
      _
    $region15: #{tpu_custom_call.1} parent=1 // pred_check_branch
      %34 = sbr.rel (0) target = $region17
    $region16: #{tpu_custom_call.1} parent=1 // pred_region
      _
    $region17: #{tpu_custom_call.1} parent=1 // pred_fallthru
      _
    // Predicated region
    $region18: #{tpu_custom_call.1} parent=1 // pred_check
      _
    $region19: #{tpu_custom_call.1} parent=1 // pred_check_branch
      %36 = sbr.rel (0) target = $region21
    $region20: #{tpu_custom_call.1} parent=1 // pred_region
      %s38 = ssub.s32 16, 16
      %39 = vsyncadd [#allocation9], %s38
      %s41 = sshll.u32 %s4, 4
      %s42 = int_to_ptr.vmem [resolvable:$true] %s41
      %44 = dma.vmem_to_smem %s42, 16, [#allocation10], [#allocation9]
    $region21: #{tpu_custom_call.1} parent=1 // pred_fallthru
      _
    // Predicated region
    $region22: #{tpu_custom_call.1} parent=1 // pred_check
      _
    $region23: #{tpu_custom_call.1} parent=1 // pred_check_branch
      %46 = sbr.rel (0) target = $region25
    $region24: #{tpu_custom_call.1} parent=1 // pred_region
      %s48 = ssub.s32 16, 16
      %49 = vsyncadd [#allocation12], %s48
      %s51 = sshll.u32 %s5, 4
      %s52 = int_to_ptr.vmem [resolvable:$true] %s51
      %54 = dma.vmem_to_smem %s52, 16, [#allocation11], [#allocation12]
    $region25: #{tpu_custom_call.1} parent=1 // pred_fallthru
      _
    // Predicated region
    $region26: #{tpu_custom_call.1} parent=1 // pred_check
      _
    $region27: #{tpu_custom_call.1} parent=1 // pred_check_branch
      %56 = sbr.rel (0) target = $region29
    $region28: #{tpu_custom_call.1} parent=1 // pred_region
      %57 = dma.done [#allocation7], 128
    $region29: #{tpu_custom_call.1} parent=1 // pred_fallthru
      _
    // Predicated region
    $region30: #{tpu_custom_call.1} parent=1 // pred_check
      _
    $region31: #{tpu_custom_call.1} parent=1 // pred_check_branch
      %59 = sbr.rel (0) target = $region33
    $region32: #{tpu_custom_call.1} parent=1 // pred_region
      %60 = dma.done [#allocation9], 16
    $region33: #{tpu_custom_call.1} parent=1 // pred_fallthru
      _
    // Predicated region
    $region34: #{tpu_custom_call.1} parent=1 // pred_check
      _
    $region35: #{tpu_custom_call.1} parent=1 // pred_check_branch
      %62 = sbr.rel (0) target = $region37
    $region36: #{tpu_custom_call.1} parent=1 // pred_region
      %63 = dma.done [#allocation12], 16
    $region37: #{tpu_custom_call.1} parent=1 // pred_fallthru
      _
    %64 = sfence
    %v65 = vld [vmem:[%s0] sm:$0xff]
    %v66 = vld [vmem:[#allocation6] sm:$0xff]
    %v67 = vmul.f32 %v65, %v65
    %vm68 = vcmask 261120
    %v69 = vsel %vm68, %v67, 0.0
    %70 = vadd.xlane.f32.xlu0 %v69
    %v71 = vpop.xlane.xlu0 %70
    %v72 = vrsqrt.pop %v71
    %v73 = vmul.f32 %v71, %v72
    %vm74 = vcmp.eq.f32.partialorder %v71, inf
    %v75 = vsel %vm74, %v71, %v73
    %vm76 = vcmp.eq.f32.partialorder %v71, 0.0
    %v77 = vand.u32 %v71, 2147483648
    %v78 = vsel %vm76, %v77, %v75
    %v79 = vrcp.pop %v78
    %v80 = vmul.f32 %v65, %v79
    %v81 = vmul.f32 %v66, %v66
    %v82 = vsel %vm68, %v81, 0.0
    %83 = vadd.xlane.f32.xlu0 %v82
    %v84 = vpop.xlane.xlu0 %83
    %v85 = vrsqrt.pop %v84
    %v86 = vmul.f32 %v84, %v85
    %vm87 = vcmp.eq.f32.partialorder %v84, inf
    %v88 = vsel %vm87, %v84, %v86
    %vm89 = vcmp.eq.f32.partialorder %v84, 0.0
    %v90 = vand.u32 %v84, 2147483648
    %v91 = vsel %vm89, %v90, %v88
    %v92 = vrcp.pop %v91
    %v93 = vmul.f32 %v66, %v92
    %94 = vst.msk [vmem:[#allocation2] sm:$0xff] %vm68, %v80
    %95 = vst.msk [vmem:[#allocation3] sm:$0xff] %vm68, %v93
    %v97 = vsel %vm68, %v80, 0
    %v100 = vsel %vm68, %v93, 0
    %102 = vmatprep.subr.mxu0 0.0
    %103 = vmatpush1.xpose.msra.mxu0 %v100
    %104 = vmatprep.subr.mxu0 0.0
    %105 = vmatpush1.xpose.msra.mxu0 0.0
    %106 = vmatprep.subr.mxu0 0.0
    %107 = vmatpush1.xpose.msra.mxu0 0.0
    %108 = vmatprep.subr.mxu0 0.0
    %109 = vmatpush1.xpose.msra.mxu0 0.0
    %110 = vmatprep.subr.mxu0 0.0
    %111 = vmatpush1.xpose.msra.mxu0 0.0
    %112 = vmatprep.subr.mxu0 0.0
    %113 = vmatpush1.xpose.msra.mxu0 0.0
    %114 = vmatprep.subr.mxu0 0.0
    %115 = vmatpush1.xpose.msra.mxu0 0.0
    %116 = vmatprep.subr.mxu0 0.0
    %117 = vmatpush1.xpose.msra.mxu0 0.0
    %118 = vmatprep.subr.mxu0 0.0
    %119 = vmatpush1.xpose.msra.mxu0 0.0
    %120 = vmatprep.subr.mxu0 0.0
    %121 = vmatpush1.xpose.msra.mxu0 0.0
    %122 = vmatprep.subr.mxu0 0.0
    %123 = vmatpush1.xpose.msra.mxu0 0.0
    %124 = vmatprep.subr.mxu0 0.0
    %125 = vmatpush1.xpose.msra.mxu0 0.0
    %126 = vmatprep.subr.mxu0 0.0
    %127 = vmatpush1.xpose.msra.mxu0 0.0
    %128 = vmatprep.subr.mxu0 0.0
    %129 = vmatpush1.xpose.msra.mxu0 0.0
    %130 = vmatprep.subr.mxu0 0.0
    %131 = vmatpush1.xpose.msra.mxu0 0.0
    %132 = vmatprep.subr.mxu0 0.0
    %133 = vmatpush1.xpose.msra.mxu0 0.0
    %134 = vmatprep.subr.mxu0 0.0
    %135 = vmatpush1.xpose.msra.mxu0 0.0
    %136 = vmatprep.subr.mxu0 0.0
    %137 = vmatpush1.xpose.msra.mxu0 0.0
    %138 = vmatprep.subr.mxu0 0.0
    %139 = vmatpush1.xpose.msra.mxu0 0.0
    %140 = vmatprep.subr.mxu0 0.0
    %141 = vmatpush1.xpose.msra.mxu0 0.0
    %142 = vmatprep.subr.mxu0 0.0
    %143 = vmatpush1.xpose.msra.mxu0 0.0
    %144 = vmatprep.subr.mxu0 0.0
    %145 = vmatpush1.xpose.msra.mxu0 0.0
    %146 = vmatprep.subr.mxu0 0.0
    %147 = vmatpush1.xpose.msra.mxu0 0.0
    %148 = vmatprep.subr.mxu0 0.0
    %149 = vmatpush1.xpose.msra.mxu0 0.0
    %150 = vmatprep.subr.mxu0 0.0
    %151 = vmatpush1.xpose.msra.mxu0 0.0
    %152 = vmatprep.subr.mxu0 0.0
    %153 = vmatpush1.xpose.msra.mxu0 0.0
    %154 = vmatprep.subr.mxu0 0.0
    %155 = vmatpush1.xpose.msra.mxu0 0.0
    %156 = vmatprep.subr.mxu0 0.0
    %157 = vmatpush1.xpose.msra.mxu0 0.0
    %158 = vmatprep.subr.mxu0 0.0
    %159 = vmatpush1.xpose.msra.mxu0 0.0
    %160 = vmatprep.subr.mxu0 0.0
    %161 = vmatpush1.xpose.msra.mxu0 0.0
    %162 = vmatprep.subr.mxu0 0.0
    %163 = vmatpush1.xpose.msra.mxu0 0.0
    %164 = vmatprep.subr.mxu0 0.0
    %165 = vmatpush1.xpose.msra.mxu0 0.0
    %166 = vmatprep.mubr.f32.mxu0 0.0
    %167 = vmatmul.mubr.f32.gmra.mrb[0].mxu0 %v97
    %v168 = vpop.f32.mrb[0].mxu0
    %v169 = vadd.f32 0.0, %v168
    %v170 = vpop.f32.mrb[0].mxu0
    %171 = vdwg.mxu0
    %172 = vmatprep.subr.mxu0 0.0
    %173 = vmatpush1.xpose.msra.mxu0 %v97
    %174 = vmatprep.subr.mxu0 0.0
    %175 = vmatpush1.xpose.msra.mxu0 0.0
    %176 = vmatprep.subr.mxu0 0.0
    %177 = vmatpush1.xpose.msra.mxu0 0.0
    %178 = vmatprep.subr.mxu0 0.0
    %179 = vmatpush1.xpose.msra.mxu0 0.0
    %180 = vmatprep.subr.mxu0 0.0
    %181 = vmatpush1.xpose.msra.mxu0 0.0
    %182 = vmatprep.subr.mxu0 0.0
    %183 = vmatpush1.xpose.msra.mxu0 0.0
    %184 = vmatprep.subr.mxu0 0.0
    %185 = vmatpush1.xpose.msra.mxu0 0.0
    %186 = vmatprep.subr.mxu0 0.0
    %187 = vmatpush1.xpose.msra.mxu0 0.0
    %188 = vmatprep.subr.mxu0 0.0
    %189 = vmatpush1.xpose.msra.mxu0 0.0
    %190 = vmatprep.subr.mxu0 0.0
    %191 = vmatpush1.xpose.msra.mxu0 0.0
    %192 = vmatprep.subr.mxu0 0.0
    %193 = vmatpush1.xpose.msra.mxu0 0.0
    %194 = vmatprep.subr.mxu0 0.0
    %195 = vmatpush1.xpose.msra.mxu0 0.0
    %196 = vmatprep.subr.mxu0 0.0
    %197 = vmatpush1.xpose.msra.mxu0 0.0
    %198 = vmatprep.subr.mxu0 0.0
    %199 = vmatpush1.xpose.msra.mxu0 0.0
    %200 = vmatprep.subr.mxu0 0.0
    %201 = vmatpush1.xpose.msra.mxu0 0.0
    %202 = vmatprep.subr.mxu0 0.0
    %203 = vmatpush1.xpose.msra.mxu0 0.0
    %204 = vmatprep.subr.mxu0 0.0
    %205 = vmatpush1.xpose.msra.mxu0 0.0
    %206 = vmatprep.subr.mxu0 0.0
    %207 = vmatpush1.xpose.msra.mxu0 0.0
    %208 = vmatprep.subr.mxu0 0.0
    %209 = vmatpush1.xpose.msra.mxu0 0.0
    %210 = vmatprep.subr.mxu0 0.0
    %211 = vmatpush1.xpose.msra.mxu0 0.0
    %212 = vmatprep.subr.mxu0 0.0
    %213 = vmatpush1.xpose.msra.mxu0 0.0
    %214 = vmatprep.subr.mxu0 0.0
    %215 = vmatpush1.xpose.msra.mxu0 0.0
    %216 = vmatprep.subr.mxu0 0.0
    %217 = vmatpush1.xpose.msra.mxu0 0.0
    %218 = vmatprep.subr.mxu0 0.0
    %219 = vmatpush1.xpose.msra.mxu0 0.0
    %220 = vmatprep.subr.mxu0 0.0
    %221 = vmatpush1.xpose.msra.mxu0 0.0
    %222 = vmatprep.subr.mxu0 0.0
    %223 = vmatpush1.xpose.msra.mxu0 0.0
    %224 = vmatprep.subr.mxu0 0.0
    %225 = vmatpush1.xpose.msra.mxu0 0.0
    %226 = vmatprep.subr.mxu0 0.0
    %227 = vmatpush1.xpose.msra.mxu0 0.0
    %228 = vmatprep.subr.mxu0 0.0
    %229 = vmatpush1.xpose.msra.mxu0 0.0
    %230 = vmatprep.subr.mxu0 0.0
    %231 = vmatpush1.xpose.msra.mxu0 0.0
    %232 = vmatprep.subr.mxu0 0.0
    %233 = vmatpush1.xpose.msra.mxu0 0.0
    %234 = vmatprep.subr.mxu0 0.0
    %235 = vmatpush1.xpose.msra.mxu0 0.0
    %236 = vmatprep.mubr.f32.mxu0 0.0
    %237 = vmatmul.mubr.f32.gmra.mrb[0].mxu0 %v100
    %v238 = vpop.f32.mrb[0].mxu0
    %v239 = vadd.f32 0.0, %v238
    %v240 = vpop.f32.mrb[0].mxu0
    %241 = vdwg.mxu0
    %v242 = vmul.f32 %v169, 15.0
    %v243 = vmul.f32 %v242, 1.442695
    %v244 = vpow.pop %v243
    %vm245 = vcmask 64512
    %246 = vst.msk [vmem:[#allocation4] sm:$0xff] %vm245, %v244
    %v247 = vmul.f32 %v239, 15.0
    %v248 = vmul.f32 %v247, 1.442695
    %v249 = vpow.pop %v248
    %250 = vst.msk [vmem:[#allocation5] sm:$0xff] %vm245, %v249
    %v251 = vld [vmem:[%s2] sm:$0xff]
    %v252 = vld [vmem:[%s3] sm:$0x1]
    %s253 = sld [smem:[#allocation10]]
    %v254 = vstv %s253
    %vm255 = vcmp.eq.s32.totalorder %v251, %v254
    %v256 = vsel %vm255, 1, 0
    %v257 = vcvt.s32.f32 %v256
    %vm258 = vcmp.eq.s32.totalorder %v252, %v254
    %v259 = vsel %vm258, 1, 0
    %v260 = vcvt.s32.f32 %v259
    %v261 = vsub.f32 1.0, %v260
    %263 = vset.pattern.permute.xlu0 0
    %264 = vperm.xlu0 %263, %v257
    %v265 = vpop.permute.xlu0 %264
    %v268 = vlaneseq
    %v269 = vshrl.u32 %v268, 7
    %v270 = vsub.s32 0, %v269
    %v271 = vrot.slane %v261, %v270
    %v273 = vmul.f32 %v265, %v271
    %v274 = vld [vmem:[#allocation4] sm:$0x1]
    %v275 = vld [vmem:[#allocation5] sm:$0x1]
    %v276 = vld [vmem:[#allocation2] sm:$0x1]
    %v277 = vld [vmem:[#allocation3] sm:$0x1]
    %v278 = vlaneseq
    %v279 = vshrl.u32 %v278, 7
    %v280 = vsub.s32 0, %v279
    %v281 = vrot.slane %v276, %v280
    %v282 = vmul.f32 %v93, %v281
    %v283 = vsel %vm68, %v282, 0.0
    %284 = vadd.xlane.f32.xlu0 %v283
    %v285 = vpop.xlane.xlu0 %284
    %v286 = vmul.f32 %v285, -15.0
    %v287 = vmul.f32 %v286, 1.442695
    %v288 = vpow.pop %v287
    %v289 = vlaneseq
    %v290 = vshrl.u32 %v289, 7
    %v291 = vsub.s32 0, %v290
    %v292 = vrot.slane %v277, %v291
    %v293 = vmul.f32 %v80, %v292
    %v294 = vsel %vm68, %v293, 0.0
    %295 = vadd.xlane.f32.xlu0 %v294
    %v296 = vpop.xlane.xlu0 %295
    %v297 = vmul.f32 %v296, -15.0
    %v298 = vmul.f32 %v297, 1.442695
    %v299 = vpow.pop %v298
    %v300 = vlaneseq
    %v301 = vshrl.u32 %v300, 7
    %v302 = vsub.s32 0, %v301
    %v303 = vrot.slane %v274, %v302
    %v304 = vmul.f32 %v288, %v303
    %v305 = vadd.f32 %v304, 1.0
    %v306 = vlog2.pop %v305
    %v307 = vmul.f32 %v306, 0.6931472
    %v308 = vlaneseq
    %v309 = vshrl.u32 %v308, 7
    %v310 = vsub.s32 0, %v309
    %v311 = vrot.slane %v275, %v310
    %v312 = vmul.f32 %v299, %v311
    %v313 = vadd.f32 %v312, 1.0
    %v314 = vlog2.pop %v313
    %v315 = vmul.f32 %v314, 0.6931472
    %v316 = vadd.f32 %v307, %v315
    %v317 = vmul.f32 %v273, %v316
    %v318 = vsel %vm245, %v317, 0.0
    %319 = vadd.xlane.f32.xlu0 %v318
    %v320 = vpop.xlane.xlu0 %319
    %v321 = vrot.slane %v320, 4
    %v322 = vadd.f32 %v320, %v321
    %v323 = vrot.slane %v322, 2
    %v324 = vadd.f32 %v322, %v323
    %v325 = vrot.slane %v324, 1
    %v326 = vadd.f32 %v324, %v325
    %s327 = vtos %v326
    %s328 = sld [smem:[#allocation11]]
    %s329 = smul.f32 %s327, %s328
    %s330 = sadd.f32 %s329, 0.0
    %s331 = sld [smem:[#allocation10 + $0x1]]
    %v332 = vstv %s331
    %vm333 = vcmp.eq.s32.totalorder %v251, %v332
    %v334 = vsel %vm333, 1, 0
    %v335 = vcvt.s32.f32 %v334
    %vm336 = vcmp.eq.s32.totalorder %v252, %v332
    %v337 = vsel %vm336, 1, 0
    %v338 = vcvt.s32.f32 %v337
    %v339 = vsub.f32 1.0, %v338
    %341 = vset.pattern.permute.xlu0 0
    %342 = vperm.xlu0 %341, %v335
    %v343 = vpop.permute.xlu0 %342
    %v346 = vlaneseq
    %v347 = vshrl.u32 %v346, 7
    %v348 = vsub.s32 0, %v347
    %v349 = vrot.slane %v339, %v348
    %v351 = vmul.f32 %v343, %v349
    %v352 = vld [vmem:[#allocation4 + $0x1] sm:$0x1]
    %v353 = vld [vmem:[#allocation5 + $0x1] sm:$0x1]
    %v354 = vld [vmem:[#allocation2 + $0x1] sm:$0x1]
    %v355 = vld [vmem:[#allocation3 + $0x1] sm:$0x1]
    %v356 = vlaneseq
    %v357 = vshrl.u32 %v356, 7
    %v358 = vsub.s32 0, %v357
    %v359 = vrot.slane %v354, %v358
    %v360 = vmul.f32 %v93, %v359
    %v361 = vsel %vm68, %v360, 0.0
    %362 = vadd.xlane.f32.xlu0 %v361
    %v363 = vpop.xlane.xlu0 %362
    %v364 = vmul.f32 %v363, -15.0
    %v365 = vmul.f32 %v364, 1.442695
    %v366 = vpow.pop %v365
    %v367 = vlaneseq
    %v368 = vshrl.u32 %v367, 7
    %v369 = vsub.s32 0, %v368
    %v370 = vrot.slane %v355, %v369
    %v371 = vmul.f32 %v80, %v370
    %v372 = vsel %vm68, %v371, 0.0
    %373 = vadd.xlane.f32.xlu0 %v372
    %v374 = vpop.xlane.xlu0 %373
    %v375 = vmul.f32 %v374, -15.0
    %v376 = vmul.f32 %v375, 1.442695
    %v377 = vpow.pop %v376
    %v378 = vlaneseq
    %v379 = vshrl.u32 %v378, 7
    %v380 = vsub.s32 0, %v379
    %v381 = vrot.slane %v352, %v380
    %v382 = vmul.f32 %v366, %v381
    %v383 = vadd.f32 %v382, 1.0
    %v384 = vlog2.pop %v383
    %v385 = vmul.f32 %v384, 0.6931472
    %v386 = vlaneseq
    %v387 = vshrl.u32 %v386, 7
    %v388 = vsub.s32 0, %v387
    %v389 = vrot.slane %v353, %v388
    %v390 = vmul.f32 %v377, %v389
    %v391 = vadd.f32 %v390, 1.0
    %v392 = vlog2.pop %v391
    %v393 = vmul.f32 %v392, 0.6931472
    %v394 = vadd.f32 %v385, %v393
    %v395 = vmul.f32 %v351, %v394
    %v396 = vsel %vm245, %v395, 0.0
    %397 = vadd.xlane.f32.xlu0 %v396
    %v398 = vpop.xlane.xlu0 %397
    %v399 = vrot.slane %v398, 4
    %v400 = vadd.f32 %v398, %v399
    %v401 = vrot.slane %v400, 2
    %v402 = vadd.f32 %v400, %v401
    %v403 = vrot.slane %v402, 1
    %v404 = vadd.f32 %v402, %v403
    %s405 = vtos %v404
    %s406 = sld [smem:[#allocation11 + $0x1]]
    %s407 = smul.f32 %s405, %s406
    %s408 = sadd.f32 %s330, %s407
    %s409 = sld [smem:[#allocation10 + $0x2]]
    %v410 = vstv %s409
    %vm411 = vcmp.eq.s32.totalorder %v251, %v410
    %v412 = vsel %vm411, 1, 0
    %v413 = vcvt.s32.f32 %v412
    %vm414 = vcmp.eq.s32.totalorder %v252, %v410
    %v415 = vsel %vm414, 1, 0
    %v416 = vcvt.s32.f32 %v415
    %v417 = vsub.f32 1.0, %v416
    %419 = vset.pattern.permute.xlu0 0
    %420 = vperm.xlu0 %419, %v413
    %v421 = vpop.permute.xlu0 %420
    %v424 = vlaneseq
    %v425 = vshrl.u32 %v424, 7
    %v426 = vsub.s32 0, %v425
    %v427 = vrot.slane %v417, %v426
    %v429 = vmul.f32 %v421, %v427
    %v430 = vld [vmem:[#allocation4 + $0x2] sm:$0x1]
    %v431 = vld [vmem:[#allocation5 + $0x2] sm:$0x1]
    %v432 = vld [vmem:[#allocation2 + $0x2] sm:$0x1]
    %v433 = vld [vmem:[#allocation3 + $0x2] sm:$0x1]
    %v434 = vlaneseq
    %v435 = vshrl.u32 %v434, 7
    %v436 = vsub.s32 0, %v435
    %v437 = vrot.slane %v432, %v436
    %v438 = vmul.f32 %v93, %v437
    %v439 = vsel %vm68, %v438, 0.0
    %440 = vadd.xlane.f32.xlu0 %v439
    %v441 = vpop.xlane.xlu0 %440
    %v442 = vmul.f32 %v441, -15.0
    %v443 = vmul.f32 %v442, 1.442695
    %v444 = vpow.pop %v443
    %v445 = vlaneseq
    %v446 = vshrl.u32 %v445, 7
    %v447 = vsub.s32 0, %v446
    %v448 = vrot.slane %v433, %v447
    %v449 = vmul.f32 %v80, %v448
    %v450 = vsel %vm68, %v449, 0.0
    %451 = vadd.xlane.f32.xlu0 %v450
    %v452 = vpop.xlane.xlu0 %451
    %v453 = vmul.f32 %v452, -15.0
    %v454 = vmul.f32 %v453, 1.442695
    %v455 = vpow.pop %v454
    %v456 = vlaneseq
    %v457 = vshrl.u32 %v456, 7
    %v458 = vsub.s32 0, %v457
    %v459 = vrot.slane %v430, %v458
    %v460 = vmul.f32 %v444, %v459
    %v461 = vadd.f32 %v460, 1.0
    %v462 = vlog2.pop %v461
    %v463 = vmul.f32 %v462, 0.6931472
    %v464 = vlaneseq
    %v465 = vshrl.u32 %v464, 7
    %v466 = vsub.s32 0, %v465
    %v467 = vrot.slane %v431, %v466
    %v468 = vmul.f32 %v455, %v467
    %v469 = vadd.f32 %v468, 1.0
    %v470 = vlog2.pop %v469
    %v471 = vmul.f32 %v470, 0.6931472
    %v472 = vadd.f32 %v463, %v471
    %v473 = vmul.f32 %v429, %v472
    %v474 = vsel %vm245, %v473, 0.0
    %475 = vadd.xlane.f32.xlu0 %v474
    %v476 = vpop.xlane.xlu0 %475
    %v477 = vrot.slane %v476, 4
    %v478 = vadd.f32 %v476, %v477
    %v479 = vrot.slane %v478, 2
    %v480 = vadd.f32 %v478, %v479
    %v481 = vrot.slane %v480, 1
    %v482 = vadd.f32 %v480, %v481
    %s483 = vtos %v482
    %s484 = sld [smem:[#allocation11 + $0x2]]
    %s485 = smul.f32 %s483, %s484
    %s486 = sadd.f32 %s408, %s485
    %s487 = sld [smem:[#allocation10 + $0x3]]
    %v488 = vstv %s487
    %vm489 = vcmp.eq.s32.totalorder %v251, %v488
    %v490 = vsel %vm489, 1, 0
    %v491 = vcvt.s32.f32 %v490
    %vm492 = vcmp.eq.s32.totalorder %v252, %v488
    %v493 = vsel %vm492, 1, 0
    %v494 = vcvt.s32.f32 %v493
    %v495 = vsub.f32 1.0, %v494
    %497 = vset.pattern.permute.xlu0 0
    %498 = vperm.xlu0 %497, %v491
    %v499 = vpop.permute.xlu0 %498
    %v502 = vlaneseq
    %v503 = vshrl.u32 %v502, 7
    %v504 = vsub.s32 0, %v503
    %v505 = vrot.slane %v495, %v504
    %v507 = vmul.f32 %v499, %v505
    %v508 = vld [vmem:[#allocation4 + $0x3] sm:$0x1]
    %v509 = vld [vmem:[#allocation5 + $0x3] sm:$0x1]
    %v510 = vld [vmem:[#allocation2 + $0x3] sm:$0x1]
    %v511 = vld [vmem:[#allocation3 + $0x3] sm:$0x1]
    %v512 = vlaneseq
    %v513 = vshrl.u32 %v512, 7
    %v514 = vsub.s32 0, %v513
    %v515 = vrot.slane %v510, %v514
    %v516 = vmul.f32 %v93, %v515
    %v517 = vsel %vm68, %v516, 0.0
    %518 = vadd.xlane.f32.xlu0 %v517
    %v519 = vpop.xlane.xlu0 %518
    %v520 = vmul.f32 %v519, -15.0
    %v521 = vmul.f32 %v520, 1.442695
    %v522 = vpow.pop %v521
    %v523 = vlaneseq
    %v524 = vshrl.u32 %v523, 7
    %v525 = vsub.s32 0, %v524
    %v526 = vrot.slane %v511, %v525
    %v527 = vmul.f32 %v80, %v526
    %v528 = vsel %vm68, %v527, 0.0
    %529 = vadd.xlane.f32.xlu0 %v528
    %v530 = vpop.xlane.xlu0 %529
    %v531 = vmul.f32 %v530, -15.0
    %v532 = vmul.f32 %v531, 1.442695
    %v533 = vpow.pop %v532
    %v534 = vlaneseq
    %v535 = vshrl.u32 %v534, 7
    %v536 = vsub.s32 0, %v535
    %v537 = vrot.slane %v508, %v536
    %v538 = vmul.f32 %v522, %v537
    %v539 = vadd.f32 %v538, 1.0
    %v540 = vlog2.pop %v539
    %v541 = vmul.f32 %v540, 0.6931472
    %v542 = vlaneseq
    %v543 = vshrl.u32 %v542, 7
    %v544 = vsub.s32 0, %v543
    %v545 = vrot.slane %v509, %v544
    %v546 = vmul.f32 %v533, %v545
    %v547 = vadd.f32 %v546, 1.0
    %v548 = vlog2.pop %v547
    %v549 = vmul.f32 %v548, 0.6931472
    %v550 = vadd.f32 %v541, %v549
    %v551 = vmul.f32 %v507, %v550
    %v552 = vsel %vm245, %v551, 0.0
    %553 = vadd.xlane.f32.xlu0 %v552
    %v554 = vpop.xlane.xlu0 %553
    %v555 = vrot.slane %v554, 4
    %v556 = vadd.f32 %v554, %v555
    %v557 = vrot.slane %v556, 2
    %v558 = vadd.f32 %v556, %v557
    %v559 = vrot.slane %v558, 1
    %v560 = vadd.f32 %v558, %v559
    %s561 = vtos %v560
    %s562 = sld [smem:[#allocation11 + $0x3]]
    %s563 = smul.f32 %s561, %s562
    %s564 = sadd.f32 %s486, %s563
    %s565 = sld [smem:[#allocation10 + $0x4]]
    %v566 = vstv %s565
    %vm567 = vcmp.eq.s32.totalorder %v251, %v566
    %v568 = vsel %vm567, 1, 0
    %v569 = vcvt.s32.f32 %v568
    %vm570 = vcmp.eq.s32.totalorder %v252, %v566
    %v571 = vsel %vm570, 1, 0
    %v572 = vcvt.s32.f32 %v571
    %v573 = vsub.f32 1.0, %v572
    %575 = vset.pattern.permute.xlu0 0
    %576 = vperm.xlu0 %575, %v569
    %v577 = vpop.permute.xlu0 %576
    %v580 = vlaneseq
    %v581 = vshrl.u32 %v580, 7
    %v582 = vsub.s32 0, %v581
    %v583 = vrot.slane %v573, %v582
    %v585 = vmul.f32 %v577, %v583
    %v586 = vld [vmem:[#allocation4 + $0x4] sm:$0x1]
    %v587 = vld [vmem:[#allocation5 + $0x4] sm:$0x1]
    %v588 = vld [vmem:[#allocation2 + $0x4] sm:$0x1]
    %v589 = vld [vmem:[#allocation3 + $0x4] sm:$0x1]
    %v590 = vlaneseq
    %v591 = vshrl.u32 %v590, 7
    %v592 = vsub.s32 0, %v591
    %v593 = vrot.slane %v588, %v592
    %v594 = vmul.f32 %v93, %v593
    %v595 = vsel %vm68, %v594, 0.0
    %596 = vadd.xlane.f32.xlu0 %v595
    %v597 = vpop.xlane.xlu0 %596
    %v598 = vmul.f32 %v597, -15.0
    %v599 = vmul.f32 %v598, 1.442695
    %v600 = vpow.pop %v599
    %v601 = vlaneseq
    %v602 = vshrl.u32 %v601, 7
    %v603 = vsub.s32 0, %v602
    %v604 = vrot.slane %v589, %v603
    %v605 = vmul.f32 %v80, %v604
    %v606 = vsel %vm68, %v605, 0.0
    %607 = vadd.xlane.f32.xlu0 %v606
    %v608 = vpop.xlane.xlu0 %607
    %v609 = vmul.f32 %v608, -15.0
    %v610 = vmul.f32 %v609, 1.442695
    %v611 = vpow.pop %v610
    %v612 = vlaneseq
    %v613 = vshrl.u32 %v612, 7
    %v614 = vsub.s32 0, %v613
    %v615 = vrot.slane %v586, %v614
    %v616 = vmul.f32 %v600, %v615
    %v617 = vadd.f32 %v616, 1.0
    %v618 = vlog2.pop %v617
    %v619 = vmul.f32 %v618, 0.6931472
    %v620 = vlaneseq
    %v621 = vshrl.u32 %v620, 7
    %v622 = vsub.s32 0, %v621
    %v623 = vrot.slane %v587, %v622
    %v624 = vmul.f32 %v611, %v623
    %v625 = vadd.f32 %v624, 1.0
    %v626 = vlog2.pop %v625
    %v627 = vmul.f32 %v626, 0.6931472
    %v628 = vadd.f32 %v619, %v627
    %v629 = vmul.f32 %v585, %v628
    %v630 = vsel %vm245, %v629, 0.0
    %631 = vadd.xlane.f32.xlu0 %v630
    %v632 = vpop.xlane.xlu0 %631
    %v633 = vrot.slane %v632, 4
    %v634 = vadd.f32 %v632, %v633
    %v635 = vrot.slane %v634, 2
    %v636 = vadd.f32 %v634, %v635
    %v637 = vrot.slane %v636, 1
    %v638 = vadd.f32 %v636, %v637
    %s639 = vtos %v638
    %s640 = sld [smem:[#allocation11 + $0x4]]
    %s641 = smul.f32 %s639, %s640
    %s642 = sadd.f32 %s564, %s641
    %s643 = sld [smem:[#allocation10 + $0x5]]
    %v644 = vstv %s643
    %vm645 = vcmp.eq.s32.totalorder %v251, %v644
    %v646 = vsel %vm645, 1, 0
    %v647 = vcvt.s32.f32 %v646
    %vm648 = vcmp.eq.s32.totalorder %v252, %v644
    %v649 = vsel %vm648, 1, 0
    %v650 = vcvt.s32.f32 %v649
    %v651 = vsub.f32 1.0, %v650
    %653 = vset.pattern.permute.xlu0 0
    %654 = vperm.xlu0 %653, %v647
    %v655 = vpop.permute.xlu0 %654
    %v658 = vlaneseq
    %v659 = vshrl.u32 %v658, 7
    %v660 = vsub.s32 0, %v659
    %v661 = vrot.slane %v651, %v660
    %v663 = vmul.f32 %v655, %v661
    %v664 = vld [vmem:[#allocation4 + $0x5] sm:$0x1]
    %v665 = vld [vmem:[#allocation5 + $0x5] sm:$0x1]
    %v666 = vld [vmem:[#allocation2 + $0x5] sm:$0x1]
    %v667 = vld [vmem:[#allocation3 + $0x5] sm:$0x1]
    %v668 = vlaneseq
    %v669 = vshrl.u32 %v668, 7
    %v670 = vsub.s32 0, %v669
    %v671 = vrot.slane %v666, %v670
    %v672 = vmul.f32 %v93, %v671
    %v673 = vsel %vm68, %v672, 0.0
    %674 = vadd.xlane.f32.xlu0 %v673
    %v675 = vpop.xlane.xlu0 %674
    %v676 = vmul.f32 %v675, -15.0
    %v677 = vmul.f32 %v676, 1.442695
    %v678 = vpow.pop %v677
    %v679 = vlaneseq
    %v680 = vshrl.u32 %v679, 7
    %v681 = vsub.s32 0, %v680
    %v682 = vrot.slane %v667, %v681
    %v683 = vmul.f32 %v80, %v682
    %v684 = vsel %vm68, %v683, 0.0
    %685 = vadd.xlane.f32.xlu0 %v684
    %v686 = vpop.xlane.xlu0 %685
    %v687 = vmul.f32 %v686, -15.0
    %v688 = vmul.f32 %v687, 1.442695
    %v689 = vpow.pop %v688
    %v690 = vlaneseq
    %v691 = vshrl.u32 %v690, 7
    %v692 = vsub.s32 0, %v691
    %v693 = vrot.slane %v664, %v692
    %v694 = vmul.f32 %v678, %v693
    %v695 = vadd.f32 %v694, 1.0
    %v696 = vlog2.pop %v695
    %v697 = vmul.f32 %v696, 0.6931472
    %v698 = vlaneseq
    %v699 = vshrl.u32 %v698, 7
    %v700 = vsub.s32 0, %v699
    %v701 = vrot.slane %v665, %v700
    %v702 = vmul.f32 %v689, %v701
    %v703 = vadd.f32 %v702, 1.0
    %v704 = vlog2.pop %v703
    %v705 = vmul.f32 %v704, 0.6931472
    %v706 = vadd.f32 %v697, %v705
    %v707 = vmul.f32 %v663, %v706
    %v708 = vsel %vm245, %v707, 0.0
    %709 = vadd.xlane.f32.xlu0 %v708
    %v710 = vpop.xlane.xlu0 %709
    %v711 = vrot.slane %v710, 4
    %v712 = vadd.f32 %v710, %v711
    %v713 = vrot.slane %v712, 2
    %v714 = vadd.f32 %v712, %v713
    %v715 = vrot.slane %v714, 1
    %v716 = vadd.f32 %v714, %v715
    %s717 = vtos %v716
    %s718 = sld [smem:[#allocation11 + $0x5]]
    %s719 = smul.f32 %s717, %s718
    %s720 = sadd.f32 %s642, %s719
    %s721 = sld [smem:[#allocation10 + $0x6]]
    %v722 = vstv %s721
    %vm723 = vcmp.eq.s32.totalorder %v251, %v722
    %v724 = vsel %vm723, 1, 0
    %v725 = vcvt.s32.f32 %v724
    %vm726 = vcmp.eq.s32.totalorder %v252, %v722
    %v727 = vsel %vm726, 1, 0
    %v728 = vcvt.s32.f32 %v727
    %v729 = vsub.f32 1.0, %v728
    %731 = vset.pattern.permute.xlu0 0
    %732 = vperm.xlu0 %731, %v725
    %v733 = vpop.permute.xlu0 %732
    %v736 = vlaneseq
    %v737 = vshrl.u32 %v736, 7
    %v738 = vsub.s32 0, %v737
    %v739 = vrot.slane %v729, %v738
    %v741 = vmul.f32 %v733, %v739
    %v742 = vld [vmem:[#allocation4 + $0x6] sm:$0x1]
    %v743 = vld [vmem:[#allocation5 + $0x6] sm:$0x1]
    %v744 = vld [vmem:[#allocation2 + $0x6] sm:$0x1]
    %v745 = vld [vmem:[#allocation3 + $0x6] sm:$0x1]
    %v746 = vlaneseq
    %v747 = vshrl.u32 %v746, 7
    %v748 = vsub.s32 0, %v747
    %v749 = vrot.slane %v744, %v748
    %v750 = vmul.f32 %v93, %v749
    %v751 = vsel %vm68, %v750, 0.0
    %752 = vadd.xlane.f32.xlu0 %v751
    %v753 = vpop.xlane.xlu0 %752
    %v754 = vmul.f32 %v753, -15.0
    %v755 = vmul.f32 %v754, 1.442695
    %v756 = vpow.pop %v755
    %v757 = vlaneseq
    %v758 = vshrl.u32 %v757, 7
    %v759 = vsub.s32 0, %v758
    %v760 = vrot.slane %v745, %v759
    %v761 = vmul.f32 %v80, %v760
    %v762 = vsel %vm68, %v761, 0.0
    %763 = vadd.xlane.f32.xlu0 %v762
    %v764 = vpop.xlane.xlu0 %763
    %v765 = vmul.f32 %v764, -15.0
    %v766 = vmul.f32 %v765, 1.442695
    %v767 = vpow.pop %v766
    %v768 = vlaneseq
    %v769 = vshrl.u32 %v768, 7
    %v770 = vsub.s32 0, %v769
    %v771 = vrot.slane %v742, %v770
    %v772 = vmul.f32 %v756, %v771
    %v773 = vadd.f32 %v772, 1.0
    %v774 = vlog2.pop %v773
    %v775 = vmul.f32 %v774, 0.6931472
    %v776 = vlaneseq
    %v777 = vshrl.u32 %v776, 7
    %v778 = vsub.s32 0, %v777
    %v779 = vrot.slane %v743, %v778
    %v780 = vmul.f32 %v767, %v779
    %v781 = vadd.f32 %v780, 1.0
    %v782 = vlog2.pop %v781
    %v783 = vmul.f32 %v782, 0.6931472
    %v784 = vadd.f32 %v775, %v783
    %v785 = vmul.f32 %v741, %v784
    %v786 = vsel %vm245, %v785, 0.0
    %787 = vadd.xlane.f32.xlu0 %v786
    %v788 = vpop.xlane.xlu0 %787
    %v789 = vrot.slane %v788, 4
    %v790 = vadd.f32 %v788, %v789
    %v791 = vrot.slane %v790, 2
    %v792 = vadd.f32 %v790, %v791
    %v793 = vrot.slane %v792, 1
    %v794 = vadd.f32 %v792, %v793
    %s795 = vtos %v794
    %s796 = sld [smem:[#allocation11 + $0x6]]
    %s797 = smul.f32 %s795, %s796
    %s798 = sadd.f32 %s720, %s797
    %s799 = sld [smem:[#allocation10 + $0x7]]
    %v800 = vstv %s799
    %vm801 = vcmp.eq.s32.totalorder %v251, %v800
    %v802 = vsel %vm801, 1, 0
    %v803 = vcvt.s32.f32 %v802
    %vm804 = vcmp.eq.s32.totalorder %v252, %v800
    %v805 = vsel %vm804, 1, 0
    %v806 = vcvt.s32.f32 %v805
    %v807 = vsub.f32 1.0, %v806
    %809 = vset.pattern.permute.xlu0 0
    %810 = vperm.xlu0 %809, %v803
    %v811 = vpop.permute.xlu0 %810
    %v814 = vlaneseq
    %v815 = vshrl.u32 %v814, 7
    %v816 = vsub.s32 0, %v815
    %v817 = vrot.slane %v807, %v816
    %v819 = vmul.f32 %v811, %v817
    %v820 = vld [vmem:[#allocation4 + $0x7] sm:$0x1]
    %v821 = vld [vmem:[#allocation5 + $0x7] sm:$0x1]
    %v822 = vld [vmem:[#allocation2 + $0x7] sm:$0x1]
    %v823 = vld [vmem:[#allocation3 + $0x7] sm:$0x1]
    %v824 = vlaneseq
    %v825 = vshrl.u32 %v824, 7
    %v826 = vsub.s32 0, %v825
    %v827 = vrot.slane %v822, %v826
    %v828 = vmul.f32 %v93, %v827
    %v829 = vsel %vm68, %v828, 0.0
    %830 = vadd.xlane.f32.xlu0 %v829
    %v831 = vpop.xlane.xlu0 %830
    %v832 = vmul.f32 %v831, -15.0
    %v833 = vmul.f32 %v832, 1.442695
    %v834 = vpow.pop %v833
    %v835 = vlaneseq
    %v836 = vshrl.u32 %v835, 7
    %v837 = vsub.s32 0, %v836
    %v838 = vrot.slane %v823, %v837
    %v839 = vmul.f32 %v80, %v838
    %v840 = vsel %vm68, %v839, 0.0
    %841 = vadd.xlane.f32.xlu0 %v840
    %v842 = vpop.xlane.xlu0 %841
    %v843 = vmul.f32 %v842, -15.0
    %v844 = vmul.f32 %v843, 1.442695
    %v845 = vpow.pop %v844
    %v846 = vlaneseq
    %v847 = vshrl.u32 %v846, 7
    %v848 = vsub.s32 0, %v847
    %v849 = vrot.slane %v820, %v848
    %v850 = vmul.f32 %v834, %v849
    %v851 = vadd.f32 %v850, 1.0
    %v852 = vlog2.pop %v851
    %v853 = vmul.f32 %v852, 0.6931472
    %v854 = vlaneseq
    %v855 = vshrl.u32 %v854, 7
    %v856 = vsub.s32 0, %v855
    %v857 = vrot.slane %v821, %v856
    %v858 = vmul.f32 %v845, %v857
    %v859 = vadd.f32 %v858, 1.0
    %v860 = vlog2.pop %v859
    %v861 = vmul.f32 %v860, 0.6931472
    %v862 = vadd.f32 %v853, %v861
    %v863 = vmul.f32 %v819, %v862
    %v864 = vsel %vm245, %v863, 0.0
    %865 = vadd.xlane.f32.xlu0 %v864
    %v866 = vpop.xlane.xlu0 %865
    %v867 = vrot.slane %v866, 4
    %v868 = vadd.f32 %v866, %v867
    %v869 = vrot.slane %v868, 2
    %v870 = vadd.f32 %v868, %v869
    %v871 = vrot.slane %v870, 1
    %v872 = vadd.f32 %v870, %v871
    %s873 = vtos %v872
    %s874 = sld [smem:[#allocation11 + $0x7]]
    %s875 = smul.f32 %s873, %s874
    %s876 = sadd.f32 %s798, %s875
    %v877 = vrcp.pop 16.0
    %s878 = vtos %v877
    %s879 = smul.f32 %s876, %s878
    %s880 = scalar_lea.smem [#allocation13], 0
    %881 = sst [smem:[%s880]] %s879
    %s882 = sld [smem:[#allocation10 + $0x7]]
    %v883 = vstv %s882
    %vm884 = vcmp.eq.s32.totalorder %v252, %v883
    %v885 = vsel %vm884, 1, 0
    %v886 = vcvt.s32.f32 %v885
    %v887 = vsub.f32 1.0, %v886
    %vm888 = vcmask 57344
    %v889 = vsel %vm888, %v886, 0.0
    %890 = vadd.xlane.f32.xlu0 %v889
    %v891 = vpop.xlane.xlu0 %890
    %v892 = vrot.slane %v891, 4
    %v893 = vadd.f32 %v891, %v892
    %v894 = vrot.slane %v893, 2
    %v895 = vadd.f32 %v893, %v894
    %v896 = vrot.slane %v895, 1
    %v897 = vadd.f32 %v895, %v896
    %s898 = vtos %v897
    %s899 = ssub.f32 8.0, %s898
    %v901 = vlaneseq
    %v902 = vshrl.u32 %v901, 7
    %v903 = vsub.s32 0, %v902
    %v904 = vrot.slane %v886, %v903
    %v906 = vmul.f32 %v169, %v904
    %v908 = vrot.slane %v906, 7
    %v910 = vsel %vm888, %v908, 0.0
    %911 = vadd.xlane.f32.xlu0 %v910
    %v912 = vpop.xlane.xlu0 %911
    %v913 = vrot.slane %v912, 4
    %v914 = vadd.f32 %v912, %v913
    %v915 = vrot.slane %v914, 2
    %v916 = vadd.f32 %v914, %v915
    %v917 = vrot.slane %v916, 1
    %v918 = vadd.f32 %v916, %v917
    %s919 = vtos %v918
    %v920 = vmul.f32 %v239, %v904
    %v922 = vrot.slane %v920, 7
    %v924 = vsel %vm888, %v922, 0.0
    %925 = vadd.xlane.f32.xlu0 %v924
    %v926 = vpop.xlane.xlu0 %925
    %v927 = vrot.slane %v926, 4
    %v928 = vadd.f32 %v926, %v927
    %v929 = vrot.slane %v928, 2
    %v930 = vadd.f32 %v928, %v929
    %v931 = vrot.slane %v930, 1
    %v932 = vadd.f32 %v930, %v931
    %s933 = vtos %v932
    %s934 = sadd.f32 %s919, %s933
    %s935 = smul.f32 %s934, 0.5
    %v936 = vstv %s898
    %v937 = vrcp.pop %v936
    %s938 = vtos %v937
    %s939 = smul.f32 %s935, %s938
    %s940 = scalar_lea.smem [#allocation14], 0
    %941 = sst [smem:[%s940]] %s939
    %v943 = vlaneseq
    %v944 = vshrl.u32 %v943, 7
    %v945 = vsub.s32 0, %v944
    %v946 = vrot.slane %v887, %v945
    %v948 = vmul.f32 %v169, %v946
    %v950 = vrot.slane %v948, 7
    %v952 = vsel %vm888, %v950, 0.0
    %953 = vadd.xlane.f32.xlu0 %v952
    %v954 = vpop.xlane.xlu0 %953
    %v955 = vrot.slane %v954, 4
    %v956 = vadd.f32 %v954, %v955
    %v957 = vrot.slane %v956, 2
    %v958 = vadd.f32 %v956, %v957
    %v959 = vrot.slane %v958, 1
    %v960 = vadd.f32 %v958, %v959
    %s961 = vtos %v960
    %v962 = vmul.f32 %v239, %v946
    %v964 = vrot.slane %v962, 7
    %v966 = vsel %vm888, %v964, 0.0
    %967 = vadd.xlane.f32.xlu0 %v966
    %v968 = vpop.xlane.xlu0 %967
    %v969 = vrot.slane %v968, 4
    %v970 = vadd.f32 %v968, %v969
    %v971 = vrot.slane %v970, 2
    %v972 = vadd.f32 %v970, %v971
    %v973 = vrot.slane %v972, 1
    %v974 = vadd.f32 %v972, %v973
    %s975 = vtos %v974
    %s976 = sadd.f32 %s961, %s975
    %s977 = smul.f32 %s976, 0.5
    %v978 = vstv %s899
    %v979 = vrcp.pop %v978
    %s980 = vtos %v979
    %s981 = smul.f32 %s977, %s980
    %s982 = scalar_lea.smem [#allocation16], 0
    %983 = sst [smem:[%s982]] %s981
    // Predicated region
    $region38: #{tpu_custom_call.1} parent=1 // pred_check
      _
    $region39: #{tpu_custom_call.1} parent=1 // pred_check_branch
      %985 = sbr.rel (0) target = $region41
    $region40: #{tpu_custom_call.1} parent=1 // pred_region
      %s987 = ssub.s32 16, 16
      %988 = vsyncadd [#allocation8], %s987
      %991 = dma.smem_to_hbm [#allocation13], 16, %s6, [#allocation8]
    $region41: #{tpu_custom_call.1} parent=1 // pred_fallthru
      _
    // Predicated region
    $region42: #{tpu_custom_call.1} parent=1 // pred_check
      _
    $region43: #{tpu_custom_call.1} parent=1 // pred_check_branch
      %993 = sbr.rel (0) target = $region45
    $region44: #{tpu_custom_call.1} parent=1 // pred_region
      %s995 = ssub.s32 16, 16
      %996 = vsyncadd [#allocation15], %s995
      %999 = dma.smem_to_hbm [#allocation14], 16, %s7, [#allocation15]
    $region45: #{tpu_custom_call.1} parent=1 // pred_fallthru
      _
    // Predicated region
    $region46: #{tpu_custom_call.1} parent=1 // pred_check
      _
    $region47: #{tpu_custom_call.1} parent=1 // pred_check_branch
      %1001 = sbr.rel (0) target = $region49
    $region48: #{tpu_custom_call.1} parent=1 // pred_region
      %s1003 = ssub.s32 16, 16
      %1004 = vsyncadd [#allocation15], %s1003
      %1007 = dma.smem_to_hbm [#allocation16], 16, %s8, [#allocation15]
    $region49: #{tpu_custom_call.1} parent=1 // pred_fallthru
      _
    // Predicated region
    $region50: #{tpu_custom_call.1} parent=1 // pred_check
      _
    $region51: #{tpu_custom_call.1} parent=1 // pred_check_branch
      %1009 = sbr.rel (0) target = $region53
    $region52: #{tpu_custom_call.1} parent=1 // pred_region
      %1010 = dma.done [#allocation8], 16
    $region53: #{tpu_custom_call.1} parent=1 // pred_fallthru
      _
    // Predicated region
    $region54: #{tpu_custom_call.1} parent=1 // pred_check
      _
    $region55: #{tpu_custom_call.1} parent=1 // pred_check_branch
      %1012 = sbr.rel (0) target = $region57
    $region56: #{tpu_custom_call.1} parent=1 // pred_region
      %1013 = dma.done [#allocation15], 16
    $region57: #{tpu_custom_call.1} parent=1 // pred_fallthru
      _
    // Predicated region
    $region58: #{tpu_custom_call.1} parent=1 // pred_check
      _
    $region59: #{tpu_custom_call.1} parent=1 // pred_check_branch
      %1015 = sbr.rel (0) target = $region61
    $region60: #{tpu_custom_call.1} parent=1 // pred_region
      %1016 = dma.done [#allocation15], 16
    $region61: #{tpu_custom_call.1} parent=1 // pred_fallthru
      _
    %1017 = sfence
    %1018 = vsyncpa [#allocation7], 1
    %1019 = vsyncpa [#allocation8], 1
    %1020 = vsyncpa [#allocation15], 1
    %1021 = vsyncpa [#allocation9], 1
    %1022 = vsyncpa [#allocation12], 1

</llo_original>
